<compile_context>
chip_gen: v7x
topology: tpu7x:2x2x1
jax: 0.10.0
libtpu: 0.0.40
codegen_flags: <defaults>
</compile_context>

<pallas_src>
import math

import jax
import jax.numpy as jnp
from jax.experimental import pallas as pl
from jax.experimental.pallas import tpu as pltpu

_LANE = 128
_SUBLANE = 8


def _round_up(n: int, m: int) -> int:
    return ((n + m - 1) // m) * m


def _vmem_capacity_bytes() -> int:
    try:
        cap = getattr(pltpu.get_tpu_info(), "vmem_capacity_bytes", None)
        if cap:
            return int(cap)
    except Exception:
        pass
    return 128 << 20  # conservative default (v5e/v6e physical VMEM)


def _const_spec(arr, single_buffer: bool):
    """Whole-array block, revisited every grid step (DMA'd once)."""
    ndim = arr.ndim
    index_map = lambda i: (0,) * ndim
    if single_buffer and hasattr(pl, "Buffered"):
        try:
            # Single pipeline buffer halves the resident-weight VMEM footprint;
            # only requested when the weights are big enough to matter.
            return pl.BlockSpec(arr.shape, index_map, pipeline_mode=pl.Buffered(1))
        except TypeError:
            pass
    return pl.BlockSpec(arr.shape, index_map)


def _make_grn_kernel(has_skip, has_ctx, hid_size, hid_p, out_size, out_p, cdt, precision):
    """Fused GRN kernel body for a given operand layout."""

    def kernel(*refs):
        it = iter(refs)
        x_ref = next(it)
        ctx_ref = next(it) if has_ctx else None
        w1, b1 = next(it), next(it)
        wc = next(it) if has_ctx else None
        w2, b2 = next(it), next(it)
        wg, bg = next(it), next(it)
        scale = None if has_skip else next(it)
        shift = next(it)
        o_ref = next(it)

        x = x_ref[...]

        # One MXU pass for fc1 AND the skip projection (skip cols carry the BN scale):
        #   [h_pre | resid] = x @ [w_fc1 | w_skip*scale] + [b_fc1(+b_ctx) | b_skip*scale]
        hr = jnp.dot(x.astype(cdt), w1[...],
                     preferred_element_type=jnp.float32, precision=precision) + b1[...]
        h_lin = hr[:, :hid_size]
        if has_ctx:
            h_lin = h_lin + jnp.dot(ctx_ref[...].astype(cdt), wc[...],
                                    preferred_element_type=jnp.float32,
                                    precision=precision)

        # ELU(alpha=1): exp goes to the EUP slot, select stays on the VPU.
        h = jnp.where(h_lin > 0, h_lin, jnp.exp(jnp.minimum(h_lin, 0.0)) - 1.0)

        # fc2.  TODO(synk): dropout is identity in eval mode; training-mode dropout
        # (pltpu.prng_*) is not implemented.
        y = jnp.dot(h.astype(cdt), w2[...],
                    preferred_element_type=jnp.float32, precision=precision) + b2[...]

        # GLU: gate and value linears fused into one matmul; value columns already
        # carry the folded BatchNorm scale.  Column split is lane-aligned (out_p).
        g = jnp.dot(y.astype(cdt), wg[...],
                    preferred_element_type=jnp.float32, precision=precision) + bg[...]
        gate = jax.nn.sigmoid(g[:, :out_size])
        val = g[:, out_p:out_p + out_size]

        if has_skip:
            resid = hr[:, hid_p:hid_p + out_size]          # BN scale already folded in
        else:
            resid = x.astype(jnp.float32) * scale[...]     # identity residual * scale

        # Eval-mode BatchNorm1d reduces to "+ shift" (scale folded into the weights).
        # TODO(synk): training-mode batch statistics (cross-row reduction) not implemented.
        o_ref[...] = (gate * val + resid + shift[...]).astype(o_ref.dtype)

    return kernel


def grn_forward(x, params, context=None, *, block_m=512, eps=1e-5,
                compute_dtype=jnp.bfloat16, out_dtype=None):
    """Fused GatedResidualNetwork forward (eval mode).

    x: (..., input_size); context: (..., context_size) or None.
    Weights in `params` are stored transposed vs PyTorch: (in_features, out_features).
    compute_dtype: dtype fed to the MXU (bf16 default = one MXU pass per dot);
    accumulation is always f32.  out_dtype defaults to x.dtype.
    """
    in_size, hid_size = params["w_fc1"].shape
    out_size = params["w_fc2"].shape[1]
    has_skip = "w_skip" in params
    has_ctx = context is not None
    assert has_skip == (in_size != out_size)
    assert in_size > 0 and out_size > 0
    # TODO(synk): the degenerate input_size==0 / output_size==0 module variants
    # (bias-only Linear / no-op GRN) are not implemented in the kernel.

    f32 = jnp.float32
    cdt = jnp.dtype(compute_dtype)
    out_dtype = x.dtype if out_dtype is None else out_dtype
    precision = jax.lax.Precision.HIGHEST if cdt == jnp.dtype(jnp.float32) else None

    lead = x.shape[:-1]
    xf = x.reshape(-1, in_size)
    M = xf.shape[0]

    hid_p = _round_up(hid_size, _LANE)
    out_p = _round_up(out_size, _LANE)

    # ---- Fold eval-mode BatchNorm into (scale, shift); fold scale into the GLU value
    # weights and the skip projection so the kernel epilogue is just "+ shift".
    scale = params["bn_gamma"].astype(f32) * jax.lax.rsqrt(params["bn_var"].astype(f32) + eps)
    shift = params["bn_beta"].astype(f32) - params["bn_mean"].astype(f32) * scale

    b_fc1 = params["b_fc1"].astype(f32)
    if has_ctx:
        b_fc1 = b_fc1 + params["b_ctx"].astype(f32)        # fold the context bias

    if has_skip:
        n1 = hid_p + out_size
        w1 = jnp.zeros((in_size, n1), f32).at[:, :hid_size].set(params["w_fc1"].astype(f32))
        w1 = w1.at[:, hid_p:].set(params["w_skip"].astype(f32) * scale[None, :])
        b1 = jnp.zeros((1, n1), f32).at[0, :hid_size].set(b_fc1)
        b1 = b1.at[0, hid_p:].set(params["b_skip"].astype(f32) * scale)
    else:
        n1 = hid_size
        w1 = params["w_fc1"].astype(f32)
        b1 = b_fc1.reshape(1, -1)

    ng = out_p + out_size
    wg = jnp.zeros((out_size, ng), f32).at[:, :out_size].set(params["w_glu1"].astype(f32))
    wg = wg.at[:, out_p:].set(params["w_glu2"].astype(f32) * scale[None, :])
    bg = jnp.zeros((1, ng), f32).at[0, :out_size].set(params["b_glu1"].astype(f32))
    bg = bg.at[0, out_p:].set(params["b_glu2"].astype(f32) * scale)

    # ---- Operands: x / context stream UNPADDED (block last dim == full feature dim),
    # weights/biases are whole-array constant blocks (DMA'd once, kept resident).
    stream_args = [xf]
    if has_ctx:
        ctx_size = context.shape[-1]
        cf = context.reshape(-1, ctx_size)
        assert cf.shape[0] == M
        stream_args.append(cf)

    const_args = [w1.astype(cdt), b1]
    if has_ctx:
        const_args.append(params["w_ctx"].astype(cdt))
    const_args += [params["w_fc2"].astype(cdt),
                   params["b_fc2"].astype(f32).reshape(1, -1),
                   wg.astype(cdt), bg]
    if not has_skip:
        const_args.append(scale.reshape(1, -1))
    const_args.append(shift.reshape(1, -1))

    const_bytes = sum(int(a.size) * a.dtype.itemsize for a in const_args)
    single_buffer = const_bytes > (2 << 20)
    weight_vmem = (1 if single_buffer else 2) * const_bytes

    # ---- Row tile: big tiles amortize per-step overhead, but keep >=2 (prefer >=4)
    # grid steps so both v7x TensorCores get work, and shrink until resident weights
    # + double-buffered streams + live f32 intermediates fit the VMEM budget.
    out_isz = jnp.dtype(out_dtype).itemsize
    per_row = 2 * (in_size * xf.dtype.itemsize + out_size * out_isz)
    if has_ctx:
        per_row += 2 * context.shape[-1] * stream_args[1].dtype.itemsize
    per_row += 4 * (n1 + hid_size + ng + 4 * out_size)      # live f32 intermediates

    bm = min(block_m, _round_up(max(M, 1), _SUBLANE))
    if M > _SUBLANE:
        bm = min(bm, _round_up(pl.cdiv(M, 2), _SUBLANE))        # >= 2 grid steps
        if pl.cdiv(M, 4) >= 256:
            bm = min(bm, _round_up(pl.cdiv(M, 4), _SUBLANE))    # >= 4 steps when cheap

    vmem_cap = _vmem_capacity_bytes()
    budget = min(vmem_cap * 3 // 4, 100 << 20)                  # ~48 MiB v7x, ~96 MiB v5e/v6e
    while bm > _SUBLANE and weight_vmem + per_row * bm > budget:
        bm = max(_SUBLANE, _round_up(bm // 2, _SUBLANE))
    grid = (pl.cdiv(M, bm),)

    needed = weight_vmem + per_row * bm
    vmem_limit = int(min(max(needed + (8 << 20), 32 << 20), budget))
    vmem_limit = int(max(vmem_limit, min(needed + (4 << 20), vmem_cap - (2 << 20))))

    in_specs = ([pl.BlockSpec((bm, a.shape[1]), lambda i: (i, 0)) for a in stream_args]
                + [_const_spec(a, single_buffer) for a in const_args])
    out_specs = pl.BlockSpec((bm, out_size), lambda i: (i, 0))

    flops = 2 * M * (in_size * n1 + hid_size * out_size + out_size * ng)
    if has_ctx:
        flops += 2 * M * context.shape[-1] * hid_size
    bytes_accessed = (sum(int(a.size) * a.dtype.itemsize for a in stream_args)
                      + const_bytes + M * out_size * out_isz)

    out = pl.pallas_call(
        _make_grn_kernel(has_skip, has_ctx, hid_size, hid_p, out_size, out_p,
                         cdt, precision),
        out_shape=jax.ShapeDtypeStruct((M, out_size), out_dtype),
        grid_spec=pltpu.PrefetchScalarGridSpec(
            num_scalar_prefetch=0, grid=grid,
            in_specs=in_specs, out_specs=out_specs),
        compiler_params=pltpu.CompilerParams(
            dimension_semantics=("parallel",),
            vmem_limit_bytes=vmem_limit),
        cost_estimate=pl.CostEstimate(
            flops=int(flops),
            transcendentals=int(M * (hid_size + out_size)),
            bytes_accessed=int(bytes_accessed)),
    )(*stream_args, *const_args)

    return out.reshape(lead + (out_size,))


def init_grn_params(key, input_size, hidden_state_size, output_size,
                    context_size=None, dtype=jnp.float32):
    """Mirrors PyTorch nn.Linear init U(-1/sqrt(in), 1/sqrt(in)); weights stored (in, out)."""
    keys = jax.random.split(key, 16)
    ki = iter(keys)

    def linear(in_f, out_f):
        bound = 1.0 / math.sqrt(max(in_f, 1))
        w = jax.random.uniform(next(ki), (in_f, out_f), dtype, -bound, bound)
        b = jax.random.uniform(next(ki), (out_f,), dtype, -bound, bound)
        return w, b

    p = {}
    p["w_fc1"], p["b_fc1"] = linear(input_size, hidden_state_size)
    if context_size is not None and context_size > 0:
        p["w_ctx"], p["b_ctx"] = linear(context_size, hidden_state_size)
    p["w_fc2"], p["b_fc2"] = linear(hidden_state_size, output_size)
    if input_size != output_size:
        p["w_skip"], p["b_skip"] = linear(input_size, output_size)
    p["w_glu1"], p["b_glu1"] = linear(output_size, output_size)
    p["w_glu2"], p["b_glu2"] = linear(output_size, output_size)
    p["bn_gamma"] = 1.0 + 0.1 * jax.random.normal(next(ki), (output_size,), dtype)
    p["bn_beta"] = 0.1 * jax.random.normal(next(ki), (output_size,), dtype)
    p["bn_mean"] = 0.05 * jax.random.normal(next(ki), (output_size,), dtype)
    p["bn_var"] = jnp.abs(1.0 + 0.1 * jax.random.normal(next(ki), (output_size,), dtype))
    return p


def grn_reference(x, params, context=None, eps=1e-5):
    """Pure-JAX f32 reference, same math as the PyTorch module in eval mode."""
    hi = jax.lax.Precision.HIGHEST
    mm = lambda a, b: jnp.dot(a, b, precision=hi)
    in_size = params["w_fc1"].shape[0]
    out_size = params["w_fc2"].shape[1]
    xf = x.reshape(-1, in_size).astype(jnp.float32)
    if "w_skip" in params:
        resid = mm(xf, params["w_skip"]) + params["b_skip"]
    else:
        resid = xf
    h = mm(xf, params["w_fc1"]) + params["b_fc1"]
    if context is not None:
        cf = context.reshape(-1, context.shape[-1]).astype(jnp.float32)
        h = h + mm(cf, params["w_ctx"]) + params["b_ctx"]
    h = jax.nn.elu(h)
    y = mm(h, params["w_fc2"]) + params["b_fc2"]
    g = jax.nn.sigmoid(mm(y, params["w_glu1"]) + params["b_glu1"]) * (
        mm(y, params["w_glu2"]) + params["b_glu2"])
    z = g + resid
    z = (z - params["bn_mean"]) * jax.lax.rsqrt(params["bn_var"] + eps) \
        * params["bn_gamma"] + params["bn_beta"]
    return z.reshape(x.shape[:-1] + (out_size,)).astype(x.dtype)


if __name__ == "__main__":
    key = jax.random.PRNGKey(0)
    kx, kc, kp, kx2, kp2 = jax.random.split(key, 5)

    # Config 1: skip + context, ragged row count (exercises the cdiv grid + masked edge).
    batch, seq = 2, 9
    input_size, hidden_size, output_size, context_size = 32, 48, 24, 16
    x = jax.random.normal(kx, (batch, seq, input_size), jnp.float32)
    context = jax.random.normal(kc, (batch, seq, context_size), jnp.float32)
    params = init_grn_params(kp, input_size, hidden_size, output_size, context_size)
    ref = grn_reference(x, params, context)

    # f32 compute path (per-dot HIGHEST precision): tight check of the fused math.
    out_f32 = jax.block_until_ready(
        grn_forward(x, params, context, compute_dtype=jnp.float32))
    assert out_f32.shape == (batch, seq, output_size), out_f32.shape
    err = float(jnp.max(jnp.abs(out_f32 - ref)))
    assert jnp.allclose(out_f32, ref, atol=2e-3, rtol=2e-3), f"f32 path max_err={err}"

    # Default bf16 compute path (one MXU pass per dot): looser tolerance.
    out_bf = jax.block_until_ready(grn_forward(x, params, context))
    err = float(jnp.max(jnp.abs(out_bf.astype(jnp.float32) - ref)))
    assert jnp.allclose(out_bf.astype(jnp.float32), ref, atol=8e-2, rtol=8e-2), \
        f"bf16 path max_err={err}"

    # Config 2: identity residual (input_size == output_size), no context.
    in2 = out2 = 24
    hid2 = 32
    x2 = jax.random.normal(kx2, (3, 5, in2), jnp.float32)
    params2 = init_grn_params(kp2, in2, hid2, out2, None)
    ref2 = grn_reference(x2, params2)
    out2_arr = jax.block_until_ready(
        grn_forward(x2, params2, compute_dtype=jnp.float32))
    err2 = float(jnp.max(jnp.abs(out2_arr - ref2)))
    assert jnp.allclose(out2_arr, ref2, atol=2e-3, rtol=2e-3), \
        f"identity-residual max_err={err2}"

    print("KERNEL_OK")
</pallas_src>

<mosaic_0001>
module attributes {stable_mosaic.version = 11 : i64} {
  func.func @kernel(%arg0: i32, %arg1: memref<16x32xf32, #tpu.memory_space<vmem>>, %arg2: memref<16x16xf32, #tpu.memory_space<vmem>>, %arg3: memref<32x152xf32, #tpu.memory_space<vmem>>, %arg4: memref<1x152xf32, #tpu.memory_space<vmem>>, %arg5: memref<16x48xf32, #tpu.memory_space<vmem>>, %arg6: memref<48x24xf32, #tpu.memory_space<vmem>>, %arg7: memref<1x24xf32, #tpu.memory_space<vmem>>, %arg8: memref<24x152xf32, #tpu.memory_space<vmem>>, %arg9: memref<1x152xf32, #tpu.memory_space<vmem>>, %arg10: memref<1x24xf32, #tpu.memory_space<vmem>>, %arg11: memref<16x24xf32, #tpu.memory_space<vmem>>) attributes {dimension_semantics = [#tpu.dimension_semantics<parallel>], iteration_bounds = array<i64: 2>, scalar_prefetch = 0 : i64, scratch_operands = 0 : i64, tpu.core_type = #tpu.core_type<tc>, window_params = [{transform_indices = @transform_0, window_bounds = array<i64: 16, 32>}, {transform_indices = @transform_1, window_bounds = array<i64: 16, 16>}, {pipeline_mode = #tpu.pipeline_mode<synchronous>, transform_indices = @transform_2, window_bounds = array<i64: 32, 152>}, {pipeline_mode = #tpu.pipeline_mode<synchronous>, transform_indices = @transform_3, window_bounds = array<i64: 1, 152>}, {pipeline_mode = #tpu.pipeline_mode<synchronous>, transform_indices = @transform_4, window_bounds = array<i64: 16, 48>}, {pipeline_mode = #tpu.pipeline_mode<synchronous>, transform_indices = @transform_5, window_bounds = array<i64: 48, 24>}, {pipeline_mode = #tpu.pipeline_mode<synchronous>, transform_indices = @transform_6, window_bounds = array<i64: 1, 24>}, {pipeline_mode = #tpu.pipeline_mode<synchronous>, transform_indices = @transform_7, window_bounds = array<i64: 24, 152>}, {pipeline_mode = #tpu.pipeline_mode<synchronous>, transform_indices = @transform_8, window_bounds = array<i64: 1, 152>}, {pipeline_mode = #tpu.pipeline_mode<synchronous>, transform_indices = @transform_9, window_bounds = array<i64: 1, 24>}, {transform_indices = @transform_10, window_bounds = array<i64: 16, 24>}]} {
    %c0 = arith.constant 0 : index
    %c0_0 = arith.constant 0 : index
    %0 = vector.load %arg1[%c0, %c0_0] : memref<16x32xf32, #tpu.memory_space<vmem>>, vector<16x32xf32>
    %c0_1 = arith.constant 0 : index
    %c0_2 = arith.constant 0 : index
    %1 = vector.load %arg3[%c0_1, %c0_2] : memref<32x152xf32, #tpu.memory_space<vmem>>, vector<32x152xf32>
    %cst = arith.constant dense<0.000000e+00> : vector<16x152xf32>
    %2 = tpu.matmul %0, %1, %cst {dimension_numbers = #tpu.dot_dimension_numbers<[1], [0], [0], [1], [0, 0, 1, 1], [], []>, precision = #tpu.contract_precision<fp32>} : vector<16x32xf32>, vector<32x152xf32>, vector<16x152xf32> -> vector<16x152xf32>
    %c0_3 = arith.constant 0 : index
    %c0_4 = arith.constant 0 : index
    %3 = vector.load %arg4[%c0_3, %c0_4] : memref<1x152xf32, #tpu.memory_space<vmem>>, vector<1x152xf32>
    %4 = vector.broadcast %3 : vector<1x152xf32> to vector<16x152xf32>
    %5 = arith.addf %2, %4 : vector<16x152xf32>
    %6 = vector.extract_strided_slice %5 {offsets = [0, 0], sizes = [16, 48], strides = [1, 1]} : vector<16x152xf32> to vector<16x48xf32>
    %c0_5 = arith.constant 0 : index
    %c0_6 = arith.constant 0 : index
    %7 = vector.load %arg2[%c0_5, %c0_6] : memref<16x16xf32, #tpu.memory_space<vmem>>, vector<16x16xf32>
    %c0_7 = arith.constant 0 : index
    %c0_8 = arith.constant 0 : index
    %8 = vector.load %arg5[%c0_7, %c0_8] : memref<16x48xf32, #tpu.memory_space<vmem>>, vector<16x48xf32>
    %cst_9 = arith.constant dense<0.000000e+00> : vector<16x48xf32>
    %9 = tpu.matmul %7, %8, %cst_9 {dimension_numbers = #tpu.dot_dimension_numbers<[1], [0], [0], [1], [0, 0, 1, 1], [], []>, precision = #tpu.contract_precision<fp32>} : vector<16x16xf32>, vector<16x48xf32>, vector<16x48xf32> -> vector<16x48xf32>
    %10 = arith.addf %6, %9 : vector<16x48xf32>
    %cst_10 = arith.constant 0.000000e+00 : f32
    %11 = vector.broadcast %cst_10 : f32 to vector<16x48xf32>
    %12 = arith.cmpf ogt, %10, %11 : vector<16x48xf32>
    %cst_11 = arith.constant 0.000000e+00 : f32
    %13 = vector.broadcast %cst_11 : f32 to vector<16x48xf32>
    %14 = arith.minimumf %10, %13 : vector<16x48xf32>
    %15 = math.exp %14 : vector<16x48xf32>
    %cst_12 = arith.constant 1.000000e+00 : f32
    %16 = vector.broadcast %cst_12 : f32 to vector<16x48xf32>
    %17 = arith.subf %15, %16 : vector<16x48xf32>
    %18 = arith.select %12, %10, %17 : vector<16x48xi1>, vector<16x48xf32>
    %c0_13 = arith.constant 0 : index
    %c0_14 = arith.constant 0 : index
    %19 = vector.load %arg6[%c0_13, %c0_14] : memref<48x24xf32, #tpu.memory_space<vmem>>, vector<48x24xf32>
    %cst_15 = arith.constant dense<0.000000e+00> : vector<16x24xf32>
    %20 = tpu.matmul %18, %19, %cst_15 {dimension_numbers = #tpu.dot_dimension_numbers<[1], [0], [0], [1], [0, 0, 1, 1], [], []>, precision = #tpu.contract_precision<fp32>} : vector<16x48xf32>, vector<48x24xf32>, vector<16x24xf32> -> vector<16x24xf32>
    %c0_16 = arith.constant 0 : index
    %c0_17 = arith.constant 0 : index
    %21 = vector.load %arg7[%c0_16, %c0_17] : memref<1x24xf32, #tpu.memory_space<vmem>>, vector<1x24xf32>
    %22 = vector.broadcast %21 : vector<1x24xf32> to vector<16x24xf32>
    %23 = arith.addf %20, %22 : vector<16x24xf32>
    %c0_18 = arith.constant 0 : index
    %c0_19 = arith.constant 0 : index
    %24 = vector.load %arg8[%c0_18, %c0_19] : memref<24x152xf32, #tpu.memory_space<vmem>>, vector<24x152xf32>
    %cst_20 = arith.constant dense<0.000000e+00> : vector<16x152xf32>
    %25 = tpu.matmul %23, %24, %cst_20 {dimension_numbers = #tpu.dot_dimension_numbers<[1], [0], [0], [1], [0, 0, 1, 1], [], []>, precision = #tpu.contract_precision<fp32>} : vector<16x24xf32>, vector<24x152xf32>, vector<16x152xf32> -> vector<16x152xf32>
    %c0_21 = arith.constant 0 : index
    %c0_22 = arith.constant 0 : index
    %26 = vector.load %arg9[%c0_21, %c0_22] : memref<1x152xf32, #tpu.memory_space<vmem>>, vector<1x152xf32>
    %27 = vector.broadcast %26 : vector<1x152xf32> to vector<16x152xf32>
    %28 = arith.addf %25, %27 : vector<16x152xf32>
    %29 = vector.extract_strided_slice %28 {offsets = [0, 0], sizes = [16, 24], strides = [1, 1]} : vector<16x152xf32> to vector<16x24xf32>
    %30 = arith.negf %29 : vector<16x24xf32>
    %31 = math.exp %30 : vector<16x24xf32>
    %cst_23 = arith.constant 1.000000e+00 : f32
    %32 = vector.broadcast %cst_23 : f32 to vector<16x24xf32>
    %33 = arith.addf %32, %31 : vector<16x24xf32>
    %34 = arith.divf %32, %33 : vector<16x24xf32>
    %35 = vector.extract_strided_slice %28 {offsets = [0, 128], sizes = [16, 24], strides = [1, 1]} : vector<16x152xf32> to vector<16x24xf32>
    %36 = vector.extract_strided_slice %5 {offsets = [0, 128], sizes = [16, 24], strides = [1, 1]} : vector<16x152xf32> to vector<16x24xf32>
    %37 = arith.mulf %34, %35 : vector<16x24xf32>
    %38 = arith.addf %37, %36 : vector<16x24xf32>
    %c0_24 = arith.constant 0 : index
    %c0_25 = arith.constant 0 : index
    %39 = vector.load %arg10[%c0_24, %c0_25] : memref<1x24xf32, #tpu.memory_space<vmem>>, vector<1x24xf32>
    %40 = vector.broadcast %39 : vector<1x24xf32> to vector<16x24xf32>
    %41 = arith.addf %38, %40 : vector<16x24xf32>
    %c0_26 = arith.constant 0 : index
    %c0_27 = arith.constant 0 : index
    %42 = vector.load %arg11[%c0_26, %c0_27] : memref<16x24xf32, #tpu.memory_space<vmem>>, vector<16x24xf32>
    tpu.vector_store %arg11[%c0_26, %c0_27], %41 {strides = array<i32>} : memref<16x24xf32, #tpu.memory_space<vmem>>, vector<16x24xf32>,
    return
  }
  func.func @transform_0(%arg0: i32) -> (i32, i32) {
    %c0_i32 = arith.constant 0 : i32
    %c0_i32_0 = arith.constant 0 : i32
    return %arg0, %c0_i32 : i32, i32
  }
  func.func @transform_1(%arg0: i32) -> (i32, i32) {
    %c0_i32 = arith.constant 0 : i32
    %c0_i32_0 = arith.constant 0 : i32
    return %arg0, %c0_i32 : i32, i32
  }
  func.func @transform_2(%arg0: i32) -> (i32, i32) {
    %c0_i32 = arith.constant 0 : i32
    %c0_i32_0 = arith.constant 0 : i32
    %c0_i32_1 = arith.constant 0 : i32
    return %c0_i32, %c0_i32_0 : i32, i32
  }
  func.func @transform_3(%arg0: i32) -> (i32, i32) {
    %c0_i32 = arith.constant 0 : i32
    %c0_i32_0 = arith.constant 0 : i32
    %c0_i32_1 = arith.constant 0 : i32
    return %c0_i32, %c0_i32_0 : i32, i32
  }
  func.func @transform_4(%arg0: i32) -> (i32, i32) {
    %c0_i32 = arith.constant 0 : i32
    %c0_i32_0 = arith.constant 0 : i32
    %c0_i32_1 = arith.constant 0 : i32
    return %c0_i32, %c0_i32_0 : i32, i32
  }
  func.func @transform_5(%arg0: i32) -> (i32, i32) {
    %c0_i32 = arith.constant 0 : i32
    %c0_i32_0 = arith.constant 0 : i32
    %c0_i32_1 = arith.constant 0 : i32
    return %c0_i32, %c0_i32_0 : i32, i32
  }
  func.func @transform_6(%arg0: i32) -> (i32, i32) {
    %c0_i32 = arith.constant 0 : i32
    %c0_i32_0 = arith.constant 0 : i32
    %c0_i32_1 = arith.constant 0 : i32
    return %c0_i32, %c0_i32_0 : i32, i32
  }
  func.func @transform_7(%arg0: i32) -> (i32, i32) {
    %c0_i32 = arith.constant 0 : i32
    %c0_i32_0 = arith.constant 0 : i32
    %c0_i32_1 = arith.constant 0 : i32
    return %c0_i32, %c0_i32_0 : i32, i32
  }
  func.func @transform_8(%arg0: i32) -> (i32, i32) {
    %c0_i32 = arith.constant 0 : i32
    %c0_i32_0 = arith.constant 0 : i32
    %c0_i32_1 = arith.constant 0 : i32
    return %c0_i32, %c0_i32_0 : i32, i32
  }
  func.func @transform_9(%arg0: i32) -> (i32, i32) {
    %c0_i32 = arith.constant 0 : i32
    %c0_i32_0 = arith.constant 0 : i32
    %c0_i32_1 = arith.constant 0 : i32
    return %c0_i32, %c0_i32_0 : i32, i32
  }
  func.func @transform_10(%arg0: i32) -> (i32, i32) {
    %c0_i32 = arith.constant 0 : i32
    %c0_i32_0 = arith.constant 0 : i32
    return %arg0, %c0_i32 : i32, i32
  }
}

</mosaic_0001>

<llo_original>
// kernel: tpu_custom_call.1
$region0: #{tpu_custom_call.1}
  #allocation0 [shape = 'u32[]', space=smem, size = 0x4, offset = 0x4, fixed_abs, tag = 'smem constant byte address 0x4 - core index']
  #allocation1 [shape = 'u32[144,128]{1,0:T(1,128)}', space=vmem, size = 0x12000, scoped, tag = 'internal scratch']
  %s0 = inlined_call_operand.hbm [shape: f32[18,32], index: 0, kind: input, shape index: {}]
  %s1 = inlined_call_operand.vmem [shape: f32[18,16], index: 1, kind: input, shape index: {}]
  %s2 = inlined_call_operand.vmem [shape: f32[32,152], index: 2, kind: input, shape index: {}]
  %s3 = inlined_call_operand.vmem [shape: f32[1,152], index: 3, kind: input, shape index: {}]
  %s4 = inlined_call_operand.hbm [shape: f32[16,48], index: 4, kind: input, shape index: {}]
  %s5 = inlined_call_operand.vmem [shape: f32[48,24], index: 5, kind: input, shape index: {}]
  %s6 = inlined_call_operand.vmem [shape: f32[1,24], index: 6, kind: input, shape index: {}]
  %s7 = inlined_call_operand.vmem [shape: f32[24,152], index: 7, kind: input, shape index: {}]
  %s8 = inlined_call_operand.vmem [shape: f32[1,152], index: 8, kind: input, shape index: {}]
  %s9 = inlined_call_operand.vmem [shape: f32[1,24], index: 9, kind: input, shape index: {}]
  %s10 = inlined_call_operand.hbm [shape: f32[18,24], index: 10, kind: output, shape index: {}]
  %s11 = sld [smem:[#allocation0]]
  $region81: #{tpu_custom_call.1} parent=0
    _
  %s13 = ssub.s32 1, %s11
  %s14 = scalar_select 0, %s13, %s11
  $region1: #{tpu_custom_call.1} parent=0
    #allocation2 [shape = 'u8[16384]{0}', space=vmem, size = 0x4000, scoped, tag = 'input window, operand 0']
    #allocation3 [shape = 's32[2]{0}', space=sflag, size = 0x8, scoped, tag = 'scoped memory for tpu_custom_call.1']
    #allocation4 [shape = 's32[2]{0}', space=sflag, size = 0x8, scoped, tag = 'scoped memory for tpu_custom_call.1']
    #allocation5 [shape = 'u8[8192]{0}', space=vmem, size = 0x2000, scoped, tag = 'input window, operand 4, single buffered']
    #allocation6 [shape = 's32[1]{0}', space=sflag, size = 0x4, scoped, tag = 'scoped memory for tpu_custom_call.1']
    #allocation7 [shape = 'u8[16384]{0}', space=vmem, size = 0x4000, scoped, tag = 'output window, operand 0']
    %15 = vsyncpa [#allocation3], 0
    %s16 = scalar_lea.sflag [#allocation3], 1
    %17 = vsyncpa %s16, 0
    %18 = vsyncpa [#allocation6], 0
    %19 = vsyncpa [#allocation4], 0
    %s20 = scalar_lea.sflag [#allocation4], 1
    %21 = vsyncpa %s20, 0
    loop: start=0, step=1, limit=4
    $region2: #{tpu_custom_call.1} parent=1 // loop_pre_header
      _
    $region3: #{tpu_custom_call.1} parent=1 // loop_header
      %s23 = sphi 0, %s27
      %p24 = scmp.ge.s32.totalorder %s23, 4
      %s33 = sphi 0, %s35
      %s36 = sphi 0, %s33
      %s37 = sphi 0, %s36
      %s53 = sphi 0, %s37
      %s59 = sphi 0, %s61
      %s62 = sphi 0, %s59
      %s63 = sphi 0, %s62
      %s79 = sphi 0, %s63
      %s83 = sphi 0, %s83
      %s85 = sphi 0, %s83
      %s86 = sphi 0, %s85
      %s100 = sphi 0, %s86
      %s104 = sphi 0, %s104
      %s106 = sphi 0, %s104
      %s107 = sphi 0, %s106
      %s121 = sphi 0, %s107
      %s125 = sphi 0, %s125
      %s127 = sphi 0, %s125
      %s128 = sphi 0, %s127
      %s142 = sphi 0, %s128
      %s146 = sphi 0, %s146
      %s148 = sphi 0, %s146
      %s149 = sphi 0, %s148
      %s163 = sphi 0, %s149
      %s167 = sphi 0, %s167
      %s169 = sphi 0, %s167
      %s170 = sphi 0, %s169
      %s184 = sphi 0, %s170
      %s188 = sphi 0, %s188
      %s190 = sphi 0, %s188
      %s191 = sphi 0, %s190
      %s205 = sphi 0, %s191
      %s209 = sphi 0, %s209
      %s211 = sphi 0, %s209
      %s212 = sphi 0, %s211
      %s226 = sphi 0, %s212
      %s230 = sphi 0, %s230
      %s232 = sphi 0, %s230
      %s233 = sphi 0, %s232
      %s247 = sphi 0, %s233
      %s253 = sphi 0, %s255
      %s256 = sphi 0, %s253
      %s257 = sphi 0, %s256
      %s273 = sphi 0, %s257
    $region4: #{tpu_custom_call.1} parent=1 // loop_header_branch
      %26 = sbr.rel (%p24) target = $region8
    $region5: #{tpu_custom_call.1} parent=1 // loop_body
      %s28 = ssub.s32 %s23, 1
      %s29 = ssub.s32 %s23, 2
      %s30 = sadd.s32 %s23, 1
      %s31 = ssub.s32 %s23, %s30
      %p32 = scmp.eq.s32.totalorder %s31, 0
      %s34 = sadd.s32 %s33, 1
      %s35 = scalar_select %p32, %s33, %s34
      %p38 = pneg %p32
      %p39 = scmp.eq.s32.totalorder %s23, 1
      %p40 = por %p38, %p39
      %p41 = scmp.ne.s32.totalorder %s33, %s36
      %p42 = scmp.eq.s32.totalorder %s23, 0
      %p43 = por %p41, %p42
      %p44 = scmp.ne.s32.totalorder %s33, %s36
      %p45 = scmp.eq.s32.totalorder %s28, 1
      %p46 = por %p44, %p45
      %p47 = scmp.ne.s32.totalorder %s36, %s37
      %p48 = scmp.eq.s32.totalorder %s28, 0
      %p49 = por %p47, %p48
      %p50 = scmp.ne.s32.totalorder %s36, %s37
      %p51 = scmp.eq.s32.totalorder %s29, 1
      %p52 = por %p50, %p51
      %p54 = scmp.ne.s32.totalorder %s37, %s53
      %p55 = scmp.eq.s32.totalorder %s29, 0
      %p56 = por %p54, %p55
      %s57 = ssub.s32 %s23, %s30
      %p58 = scmp.eq.s32.totalorder %s57, 0
      %s60 = sadd.s32 %s59, 1
      %s61 = scalar_select %p58, %s59, %s60
      %p64 = pneg %p58
      %p65 = scmp.eq.s32.totalorder %s23, 1
      %p66 = por %p64, %p65
      %p67 = scmp.ne.s32.totalorder %s59, %s62
      %p68 = scmp.eq.s32.totalorder %s23, 0
      %p69 = por %p67, %p68
      %p70 = scmp.ne.s32.totalorder %s59, %s62
      %p71 = scmp.eq.s32.totalorder %s28, 1
      %p72 = por %p70, %p71
      %p73 = scmp.ne.s32.totalorder %s62, %s63
      %p74 = scmp.eq.s32.totalorder %s28, 0
      %p75 = por %p73, %p74
      %p76 = scmp.ne.s32.totalorder %s62, %s63
      %p77 = scmp.eq.s32.totalorder %s29, 1
      %p78 = por %p76, %p77
      %p80 = scmp.ne.s32.totalorder %s63, %s79
      %p81 = scmp.eq.s32.totalorder %s29, 0
      %p82 = por %p80, %p81
      %s84 = sadd.s32 %s83, 1
      %p87 = scmp.eq.s32.totalorder %s23, 1
      %p88 = scmp.ne.s32.totalorder %s83, %s85
      %p89 = scmp.eq.s32.totalorder %s23, 0
      %p90 = por %p88, %p89
      %p91 = scmp.ne.s32.totalorder %s83, %s85
      %p92 = scmp.eq.s32.totalorder %s28, 1
      %p93 = por %p91, %p92
      %p94 = scmp.ne.s32.totalorder %s85, %s86
      %p95 = scmp.eq.s32.totalorder %s28, 0
      %p96 = por %p94, %p95
      %p97 = scmp.ne.s32.totalorder %s85, %s86
      %p98 = scmp.eq.s32.totalorder %s29, 1
      %p99 = por %p97, %p98
      %p101 = scmp.ne.s32.totalorder %s86, %s100
      %p102 = scmp.eq.s32.totalorder %s29, 0
      %p103 = por %p101, %p102
      %s105 = sadd.s32 %s104, 1
      %p108 = scmp.eq.s32.totalorder %s23, 1
      %p109 = scmp.ne.s32.totalorder %s104, %s106
      %p110 = scmp.eq.s32.totalorder %s23, 0
      %p111 = por %p109, %p110
      %p112 = scmp.ne.s32.totalorder %s104, %s106
      %p113 = scmp.eq.s32.totalorder %s28, 1
      %p114 = por %p112, %p113
      %p115 = scmp.ne.s32.totalorder %s106, %s107
      %p116 = scmp.eq.s32.totalorder %s28, 0
      %p117 = por %p115, %p116
      %p118 = scmp.ne.s32.totalorder %s106, %s107
      %p119 = scmp.eq.s32.totalorder %s29, 1
      %p120 = por %p118, %p119
      %p122 = scmp.ne.s32.totalorder %s107, %s121
      %p123 = scmp.eq.s32.totalorder %s29, 0
      %p124 = por %p122, %p123
      %s126 = sadd.s32 %s125, 1
      %p129 = scmp.eq.s32.totalorder %s23, 1
      %p130 = scmp.ne.s32.totalorder %s125, %s127
      %p131 = scmp.eq.s32.totalorder %s23, 0
      %p132 = por %p130, %p131
      %p133 = scmp.ne.s32.totalorder %s125, %s127
      %p134 = scmp.eq.s32.totalorder %s28, 1
      %p135 = por %p133, %p134
      %p136 = scmp.ne.s32.totalorder %s127, %s128
      %p137 = scmp.eq.s32.totalorder %s28, 0
      %p138 = por %p136, %p137
      %p139 = scmp.ne.s32.totalorder %s127, %s128
      %p140 = scmp.eq.s32.totalorder %s29, 1
      %p141 = por %p139, %p140
      %p143 = scmp.ne.s32.totalorder %s128, %s142
      %p144 = scmp.eq.s32.totalorder %s29, 0
      %p145 = por %p143, %p144
      %s147 = sadd.s32 %s146, 1
      %p150 = scmp.eq.s32.totalorder %s23, 1
      %p151 = scmp.ne.s32.totalorder %s146, %s148
      %p152 = scmp.eq.s32.totalorder %s23, 0
      %p153 = por %p151, %p152
      %p154 = scmp.ne.s32.totalorder %s146, %s148
      %p155 = scmp.eq.s32.totalorder %s28, 1
      %p156 = por %p154, %p155
      %p157 = scmp.ne.s32.totalorder %s148, %s149
      %p158 = scmp.eq.s32.totalorder %s28, 0
      %p159 = por %p157, %p158
      %p160 = scmp.ne.s32.totalorder %s148, %s149
      %p161 = scmp.eq.s32.totalorder %s29, 1
      %p162 = por %p160, %p161
      %p164 = scmp.ne.s32.totalorder %s149, %s163
      %p165 = scmp.eq.s32.totalorder %s29, 0
      %p166 = por %p164, %p165
      %s168 = sadd.s32 %s167, 1
      %p171 = scmp.eq.s32.totalorder %s23, 1
      %p172 = scmp.ne.s32.totalorder %s167, %s169
      %p173 = scmp.eq.s32.totalorder %s23, 0
      %p174 = por %p172, %p173
      %p175 = scmp.ne.s32.totalorder %s167, %s169
      %p176 = scmp.eq.s32.totalorder %s28, 1
      %p177 = por %p175, %p176
      %p178 = scmp.ne.s32.totalorder %s169, %s170
      %p179 = scmp.eq.s32.totalorder %s28, 0
      %p180 = por %p178, %p179
      %p181 = scmp.ne.s32.totalorder %s169, %s170
      %p182 = scmp.eq.s32.totalorder %s29, 1
      %p183 = por %p181, %p182
      %p185 = scmp.ne.s32.totalorder %s170, %s184
      %p186 = scmp.eq.s32.totalorder %s29, 0
      %p187 = por %p185, %p186
      %s189 = sadd.s32 %s188, 1
      %p192 = scmp.eq.s32.totalorder %s23, 1
      %p193 = scmp.ne.s32.totalorder %s188, %s190
      %p194 = scmp.eq.s32.totalorder %s23, 0
      %p195 = por %p193, %p194
      %p196 = scmp.ne.s32.totalorder %s188, %s190
      %p197 = scmp.eq.s32.totalorder %s28, 1
      %p198 = por %p196, %p197
      %p199 = scmp.ne.s32.totalorder %s190, %s191
      %p200 = scmp.eq.s32.totalorder %s28, 0
      %p201 = por %p199, %p200
      %p202 = scmp.ne.s32.totalorder %s190, %s191
      %p203 = scmp.eq.s32.totalorder %s29, 1
      %p204 = por %p202, %p203
      %p206 = scmp.ne.s32.totalorder %s191, %s205
      %p207 = scmp.eq.s32.totalorder %s29, 0
      %p208 = por %p206, %p207
      %s210 = sadd.s32 %s209, 1
      %p213 = scmp.eq.s32.totalorder %s23, 1
      %p214 = scmp.ne.s32.totalorder %s209, %s211
      %p215 = scmp.eq.s32.totalorder %s23, 0
      %p216 = por %p214, %p215
      %p217 = scmp.ne.s32.totalorder %s209, %s211
      %p218 = scmp.eq.s32.totalorder %s28, 1
      %p219 = por %p217, %p218
      %p220 = scmp.ne.s32.totalorder %s211, %s212
      %p221 = scmp.eq.s32.totalorder %s28, 0
      %p222 = por %p220, %p221
      %p223 = scmp.ne.s32.totalorder %s211, %s212
      %p224 = scmp.eq.s32.totalorder %s29, 1
      %p225 = por %p223, %p224
      %p227 = scmp.ne.s32.totalorder %s212, %s226
      %p228 = scmp.eq.s32.totalorder %s29, 0
      %p229 = por %p227, %p228
      %s231 = sadd.s32 %s230, 1
      %p234 = scmp.eq.s32.totalorder %s23, 1
      %p235 = scmp.ne.s32.totalorder %s230, %s232
      %p236 = scmp.eq.s32.totalorder %s23, 0
      %p237 = por %p235, %p236
      %p238 = scmp.ne.s32.totalorder %s230, %s232
      %p239 = scmp.eq.s32.totalorder %s28, 1
      %p240 = por %p238, %p239
      %p241 = scmp.ne.s32.totalorder %s232, %s233
      %p242 = scmp.eq.s32.totalorder %s28, 0
      %p243 = por %p241, %p242
      %p244 = scmp.ne.s32.totalorder %s232, %s233
      %p245 = scmp.eq.s32.totalorder %s29, 1
      %p246 = por %p244, %p245
      %p248 = scmp.ne.s32.totalorder %s233, %s247
      %p249 = scmp.eq.s32.totalorder %s29, 0
      %p250 = por %p248, %p249
      %s251 = ssub.s32 %s23, %s30
      %p252 = scmp.eq.s32.totalorder %s251, 0
      %s254 = sadd.s32 %s253, 1
      %s255 = scalar_select %p252, %s253, %s254
      %p258 = pneg %p252
      %p259 = scmp.eq.s32.totalorder %s23, 1
      %p260 = por %p258, %p259
      %p261 = scmp.ne.s32.totalorder %s253, %s256
      %p262 = scmp.eq.s32.totalorder %s23, 0
      %p263 = por %p261, %p262
      %p264 = scmp.ne.s32.totalorder %s253, %s256
      %p265 = scmp.eq.s32.totalorder %s28, 1
      %p266 = por %p264, %p265
      %p267 = scmp.ne.s32.totalorder %s256, %s257
      %p268 = scmp.eq.s32.totalorder %s28, 0
      %p269 = por %p267, %p268
      %p270 = scmp.ne.s32.totalorder %s256, %s257
      %p271 = scmp.eq.s32.totalorder %s29, 1
      %p272 = por %p270, %p271
      %p274 = scmp.ne.s32.totalorder %s257, %s273
      %p275 = scmp.eq.s32.totalorder %s29, 0
      %p276 = por %p274, %p275
      %p277 = scmp.le.s32.totalorder 1, %s23
      %p278 = scmp.lt.s32.totalorder %s23, 3
      %p279 = pnand %p277, %p278
      %p280 = pneg %p279
      // Predicated region
      $region9: #{tpu_custom_call.1} parent=5 // pred_check
        _
      $region10: #{tpu_custom_call.1} parent=5 // pred_check_branch
        %282 = sbr.rel (%p279) target = $region12
      $region11: #{tpu_custom_call.1} parent=5 // pred_region
        %s283 = ssub.s32 %s23, 1
        // Predicated region
        $region13: #{tpu_custom_call.1} parent=11 // pred_check
          %p284 = pneg %p96
        $region14: #{tpu_custom_call.1} parent=11 // pred_check_branch
          %286 = sbr.rel (%p284) target = $region16
        $region15: #{tpu_custom_call.1} parent=11 // pred_region
          _
        $region16: #{tpu_custom_call.1} parent=11 // pred_fallthru
          _
        // Predicated region
        $region17: #{tpu_custom_call.1} parent=11 // pred_check
          %p287 = pneg %p117
        $region18: #{tpu_custom_call.1} parent=11 // pred_check_branch
          %289 = sbr.rel (%p287) target = $region20
        $region19: #{tpu_custom_call.1} parent=11 // pred_region
          _
        $region20: #{tpu_custom_call.1} parent=11 // pred_fallthru
          _
        // Predicated region
        $region21: #{tpu_custom_call.1} parent=11 // pred_check
          %p290 = pneg %p138
        $region22: #{tpu_custom_call.1} parent=11 // pred_check_branch
          %292 = sbr.rel (%p290) target = $region24
        $region23: #{tpu_custom_call.1} parent=11 // pred_region
          %s294 = ssub.s32 256, 256
          %295 = vsyncadd [#allocation6], %s294
          %s296 = sshll.u32 [#allocation5], 4
          %s297 = int_to_ptr.vmem [resolvable:$true] %s296
          %302 = dma.hbm_to_vmem [thread:$0]  %s4, 256, %s297, [#allocation6], 128, 128, 8
        $region24: #{tpu_custom_call.1} parent=11 // pred_fallthru
          _
        // Predicated region
        $region25: #{tpu_custom_call.1} parent=11 // pred_check
          %p303 = pneg %p159
        $region26: #{tpu_custom_call.1} parent=11 // pred_check_branch
          %305 = sbr.rel (%p303) target = $region28
        $region27: #{tpu_custom_call.1} parent=11 // pred_region
          _
        $region28: #{tpu_custom_call.1} parent=11 // pred_fallthru
          _
        // Predicated region
        $region29: #{tpu_custom_call.1} parent=11 // pred_check
          %p306 = pneg %p180
        $region30: #{tpu_custom_call.1} parent=11 // pred_check_branch
          %308 = sbr.rel (%p306) target = $region32
        $region31: #{tpu_custom_call.1} parent=11 // pred_region
          _
        $region32: #{tpu_custom_call.1} parent=11 // pred_fallthru
          _
        // Predicated region
        $region33: #{tpu_custom_call.1} parent=11 // pred_check
          %p309 = pneg %p201
        $region34: #{tpu_custom_call.1} parent=11 // pred_check_branch
          %311 = sbr.rel (%p309) target = $region36
        $region35: #{tpu_custom_call.1} parent=11 // pred_region
          _
        $region36: #{tpu_custom_call.1} parent=11 // pred_fallthru
          _
        // Predicated region
        $region37: #{tpu_custom_call.1} parent=11 // pred_check
          %p312 = pneg %p222
        $region38: #{tpu_custom_call.1} parent=11 // pred_check_branch
          %314 = sbr.rel (%p312) target = $region40
        $region39: #{tpu_custom_call.1} parent=11 // pred_region
          _
        $region40: #{tpu_custom_call.1} parent=11 // pred_fallthru
          _
        // Predicated region
        $region41: #{tpu_custom_call.1} parent=11 // pred_check
          %p315 = pneg %p243
        $region42: #{tpu_custom_call.1} parent=11 // pred_check_branch
          %317 = sbr.rel (%p315) target = $region44
        $region43: #{tpu_custom_call.1} parent=11 // pred_region
          _
        $region44: #{tpu_custom_call.1} parent=11 // pred_fallthru
          _
      $region12: #{tpu_custom_call.1} parent=5 // pred_fallthru
        _
      %p318 = scmp.lt.s32.totalorder %s23, 2
      // Predicated region
      $region45: #{tpu_custom_call.1} parent=5 // pred_check
        %p319 = pneg %p318
      $region46: #{tpu_custom_call.1} parent=5 // pred_check_branch
        %321 = sbr.rel (%p319) target = $region48
      $region47: #{tpu_custom_call.1} parent=5 // pred_region
        // Predicated region
        $region49: #{tpu_custom_call.1} parent=47 // pred_check
          %p322 = pneg %p43
        $region50: #{tpu_custom_call.1} parent=47 // pred_check_branch
          %324 = sbr.rel (%p322) target = $region52
        $region51: #{tpu_custom_call.1} parent=47 // pred_region
          %s325 = sand.u32 %s33, 1
          %s326 = scalar_lea.sflag [#allocation3], %s325
          %s327 = sand.u32 %s33, 1
          %s328 = smul.addr %s327, 16
          %s329 = scalar_lea.vmem [#allocation2], %s328
          %s330 = smul.u32 2, %s23
          %s331 = ssub.s32 3, %s330
          %p332 = scmp.lt.s32.totalorder %s331, 2
          %s333 = scalar_select %p332, %s331, 2
          %s334 = smul.u32 128, %s333
          %s336 = ssub.s32 256, %s334
          %337 = vsyncadd %s326, %s336
          %p338 = scmp.ne.s32.totalorder 0, %s334
          %s339 = smul.addr %s330, 128
          %s340 = scalar_lea.hbm %s0, %s339
          %s341 = smul.u32 8, %s333
          %s342 = sshll.u32 %s329, 4
          %s343 = int_to_ptr.vmem [resolvable:$true] %s342
          %s344 = sshll.u32 %s341, 4
          %348 = dma.hbm_to_vmem [thread:$0]  (%p338), %s340, %s344, %s343, %s326, 128, 128, 8
        $region52: #{tpu_custom_call.1} parent=47 // pred_fallthru
          _
        // Predicated region
        $region53: #{tpu_custom_call.1} parent=47 // pred_check
          %p349 = pneg %p69
        $region54: #{tpu_custom_call.1} parent=47 // pred_check_branch
          %351 = sbr.rel (%p349) target = $region56
        $region55: #{tpu_custom_call.1} parent=47 // pred_region
          %s352 = smul.u32 2, %s23
          %s353 = ssub.s32 3, %s352
          %p354 = scmp.lt.s32.totalorder %s353, 2
          %s355 = scalar_select %p354, %s353, 2
          %s356 = smul.u32 128, %s355
          %p357 = scmp.lt.s32.totalorder %s352, 2
          %s358 = scalar_select %p357, %s352, 2
          %s359 = smul.addr %s358, 8
          %s360 = scalar_lea.vmem %s1, %s359
          %s361 = smul.u32 2, %s23
          %s362 = ssub.s32 3, %s361
          %p363 = scmp.lt.s32.totalorder %s362, 2
          %s364 = scalar_select %p363, %s362, 2
          %s365 = smul.u32 128, %s364
        $region56: #{tpu_custom_call.1} parent=47 // pred_fallthru
          _
      $region48: #{tpu_custom_call.1} parent=5 // pred_fallthru
        _
      %p366 = scmp.le.s32.totalorder 1, %s23
      %p367 = scmp.lt.s32.totalorder %s23, 3
      %p368 = pnand %p366, %p367
      %p369 = pneg %p368
      // Predicated region
      $region57: #{tpu_custom_call.1} parent=5 // pred_check
        _
      $region58: #{tpu_custom_call.1} parent=5 // pred_check_branch
        %371 = sbr.rel (%p368) target = $region60
      $region59: #{tpu_custom_call.1} parent=5 // pred_region
        %s372 = ssub.s32 %s23, 1
        %s373 = sand.u32 %s36, 1
        %s374 = scalar_lea.sflag [#allocation3], %s373
        %s375 = sand.u32 %s36, 1
        %s376 = smul.addr %s375, 16
        %s377 = scalar_lea.vmem [#allocation2], %s376
        // Predicated region
        $region61: #{tpu_custom_call.1} parent=59 // pred_check
          %p378 = pneg %p49
        $region62: #{tpu_custom_call.1} parent=59 // pred_check_branch
          %380 = sbr.rel (%p378) target = $region64
        $region63: #{tpu_custom_call.1} parent=59 // pred_region
          %381 = dma.done %s374, 256
        $region64: #{tpu_custom_call.1} parent=59 // pred_fallthru
          _
        // Predicated region
        $region65: #{tpu_custom_call.1} parent=59 // pred_check
          %p382 = pneg %p138
        $region66: #{tpu_custom_call.1} parent=59 // pred_check_branch
          %384 = sbr.rel (%p382) target = $region68
        $region67: #{tpu_custom_call.1} parent=59 // pred_region
          %385 = dma.done [#allocation6], 256
        $region68: #{tpu_custom_call.1} parent=59 // pred_fallthru
          _
        %s386 = sand.u32 %s36, 1
        %s387 = scalar_lea.sflag [#allocation3], %s386
        %s388 = sand.u32 %s36, 1
        %s389 = smul.addr %s388, 16
        %s390 = scalar_lea.vmem [#allocation2], %s389
        %p391 = pneg %p49
        %p392 = pneg %p46
        %s393 = smul.u32 2, %s28
        %s394 = ssub.s32 3, %s393
        %p395 = scmp.lt.s32.totalorder %s394, 2
        %s396 = scalar_select %p395, %s394, 2
        %s397 = smul.u32 128, %s396
        %p398 = scmp.lt.s32.totalorder %s393, 2
        %s399 = scalar_select %p398, %s393, 2
        %s400 = smul.addr %s399, 8
        %s401 = scalar_lea.vmem %s1, %s400
        %p402 = pneg %p75
        %p403 = pneg %p72
        %p404 = pneg %p96
        %p405 = pneg %p93
        %p406 = pneg %p117
        %p407 = pneg %p114
        %p408 = pneg %p138
        %p409 = pneg %p135
        %p410 = pneg %p159
        %p411 = pneg %p156
        %p412 = pneg %p180
        %p413 = pneg %p177
        %p414 = pneg %p201
        %p415 = pneg %p198
        %p416 = pneg %p222
        %p417 = pneg %p219
        %p418 = pneg %p243
        %p419 = pneg %p240
        %p420 = pneg %p269
        %p421 = pneg %p266
        %s422 = sand.u32 %s256, 1
        %s423 = scalar_lea.sflag [#allocation4], %s422
        %s424 = sand.u32 %s256, 1
        %s425 = smul.addr %s424, 16
        %s426 = scalar_lea.vmem [#allocation7], %s425
        %s427 = smul.u32 2, %s28
        %s428 = ssub.s32 3, %s427
        %p429 = scmp.lt.s32.totalorder %s428, 2
        %s430 = scalar_select %p429, %s428, 2
        %s431 = smul.u32 128, %s430
        %s432 = smul.u32 2, %s28
        %s433 = ssub.s32 3, %s432
        %p434 = scmp.lt.s32.totalorder %s433, 2
        %s435 = scalar_select %p434, %s433, 2
        %s436 = smul.u32 128, %s435
        %p437 = scmp.lt.s32.totalorder %s432, 2
        %s438 = scalar_select %p437, %s432, 2
        %s439 = smul.addr %s438, 8
        %s440 = scalar_lea.vmem %s1, %s439
        %s441 = smul.u32 2, %s28
        %s442 = ssub.s32 3, %s441
        %p443 = scmp.lt.s32.totalorder %s442, 2
        %s444 = scalar_select %p443, %s442, 2
        %s445 = smul.u32 128, %s444
        %s446 = smul.u32 2, %s28
        %s447 = ssub.s32 3, %s446
        %p448 = scmp.lt.s32.totalorder %s447, 2
        %s449 = scalar_select %p448, %s447, 2
        %s450 = smul.u32 128, %s449
        %v451 = vld [vmem:[%s377] sm:$0xff]
        %v452 = vld [vmem:[%s377 + $0x8] sm:$0xff]
        %v453 = vld [vmem:[%s2] sm:$0xff]
        %v454 = vld [vmem:[%s2 + $0x8] sm:$0xff]
        %v455 = vld [vmem:[%s2 + $0x10] sm:$0xff]
        %v456 = vld [vmem:[%s2 + $0x18] sm:$0xff]
        %v457 = vld [vmem:[%s2 + $0x20] sm:$0xff]
        %v458 = vld [vmem:[%s2 + $0x28] sm:$0xff]
        %v459 = vld [vmem:[%s2 + $0x30] sm:$0xff]
        %v460 = vld [vmem:[%s2 + $0x38] sm:$0xff]
        %v461 = vld [vmem:[%s3] sm:$0x3]
        %v463 = vlaneseq
        %v464 = vshrl.u32 %v463, 7
        %v465 = vsub.s32 0, %v464
        %v466 = vrot.slane %v461, %v465
        %v467 = vlaneseq
        %v468 = vshrl.u32 %v467, 7
        %v469 = vsub.s32 1, %v468
        %v470 = vrot.slane %v461, %v469
        %vm473 = vcmask 261120
        %v475 = vsel %vm473, %v451, 0
        %v478 = vsel %vm473, %v452, 0
        %v480 = vand.u32 %v454, 4294901760
        %481 = vmatprep.subr.mxu0 %v480
        %v482 = vand.u32 %v453, 4294901760
        %483 = vmatpush1.msra.mxu0 %v482
        %v484 = vand.u32 %v456, 4294901760
        %485 = vmatprep.subr.mxu0 %v484
        %v486 = vand.u32 %v455, 4294901760
        %487 = vmatpush1.msra.mxu0 %v486
        %v488 = vand.u32 %v458, 4294901760
        %489 = vmatprep.subr.mxu0 %v488
        %v490 = vand.u32 %v457, 4294901760
        %491 = vmatpush1.msra.mxu0 %v490
        %v492 = vand.u32 %v460, 4294901760
        %493 = vmatprep.subr.mxu0 %v492
        %v494 = vand.u32 %v459, 4294901760
        %495 = vmatpush1.msra.mxu0 %v494
        %496 = vmatprep.subr.mxu0 0.0
        %497 = vmatpush1.msra.mxu0 0.0
        %498 = vmatprep.subr.mxu0 0.0
        %499 = vmatpush1.msra.mxu0 0.0
        %500 = vmatprep.subr.mxu0 0.0
        %501 = vmatpush1.msra.mxu0 0.0
        %502 = vmatprep.subr.mxu0 0.0
        %503 = vmatpush1.msra.mxu0 0.0
        %504 = vmatprep.subr.mxu0 0.0
        %505 = vmatpush1.msra.mxu0 0.0
        %506 = vmatprep.subr.mxu0 0.0
        %507 = vmatpush1.msra.mxu0 0.0
        %508 = vmatprep.subr.mxu0 0.0
        %509 = vmatpush1.msra.mxu0 0.0
        %510 = vmatprep.subr.mxu0 0.0
        %511 = vmatpush1.msra.mxu0 0.0
        %512 = vmatprep.subr.mxu0 0.0
        %513 = vmatpush1.msra.mxu0 0.0
        %514 = vmatprep.subr.mxu0 0.0
        %515 = vmatpush1.msra.mxu0 0.0
        %516 = vmatprep.subr.mxu0 0.0
        %517 = vmatpush1.msra.mxu0 0.0
        %518 = vmatprep.subr.mxu0 0.0
        %519 = vmatpush1.msra.mxu0 0.0
        %520 = vmatprep.subr.mxu0 0.0
        %521 = vmatpush1.msra.mxu0 0.0
        %522 = vmatprep.subr.mxu0 0.0
        %523 = vmatpush1.msra.mxu0 0.0
        %524 = vmatprep.subr.mxu0 0.0
        %525 = vmatpush1.msra.mxu0 0.0
        %526 = vmatprep.subr.mxu0 0.0
        %527 = vmatpush1.msra.mxu0 0.0
        %528 = vmatprep.subr.mxu0 0.0
        %529 = vmatpush1.msra.mxu0 0.0
        %530 = vmatprep.subr.mxu0 0.0
        %531 = vmatpush1.msra.mxu0 0.0
        %532 = vmatprep.subr.mxu0 0.0
        %533 = vmatpush1.msra.mxu0 0.0
        %534 = vmatprep.subr.mxu0 0.0
        %535 = vmatpush1.msra.mxu0 0.0
        %536 = vmatprep.subr.mxu0 0.0
        %537 = vmatpush1.msra.mxu0 0.0
        %538 = vmatprep.subr.mxu0 0.0
        %539 = vmatpush1.msra.mxu0 0.0
        %540 = vmatprep.subr.mxu0 0.0
        %541 = vmatpush1.msra.mxu0 0.0
        %542 = vmatprep.subr.mxu0 0.0
        %543 = vmatpush1.msra.mxu0 0.0
        %544 = vmatprep.subr.mxu0 0.0
        %545 = vmatpush1.msra.mxu0 0.0
        %546 = vmatprep.subr.mxu0 0.0
        %547 = vmatpush1.msra.mxu0 0.0
        %548 = vmatprep.subr.mxu0 0.0
        %549 = vmatpush1.msra.mxu0 0.0
        %550 = vmatprep.subr.mxu0 0.0
        %551 = vmatpush1.msra.mxu0 0.0
        %552 = vmatprep.mubr.f32.mxu0 0.0
        %v553 = vand.u32 %v475, 4294901760
        %v554 = vsub.f32 %v475, %v553
        %v555 = vand.u32 %v554, 4294901760
        %v556 = vsub.f32 %v554, %v555
        %v557 = vand.u32 %v556, 4294901760
        %558 = vmatmul.mubr.f32.gmra.mrb[0].mxu0 %v557
        %v559 = vpop.f32.mrb[0].mxu0
        %v560 = vadd.f32 %v466, %v559
        %v561 = vpop.f32.mrb[0].mxu0
        %v562 = vadd.f32 %v470, %v561
        %563 = vmatprep.mubr.f32.mxu0 0.0
        %v564 = vand.u32 %v478, 4294901760
        %v565 = vsub.f32 %v478, %v564
        %v566 = vand.u32 %v565, 4294901760
        %v567 = vsub.f32 %v565, %v566
        %v568 = vand.u32 %v567, 4294901760
        %569 = vmatmul.mubr.f32.gmra.mrb[0].mxu0 %v568
        %v570 = vpop.f32.mrb[0].mxu0
        %v571 = vadd.f32 %v466, %v570
        %v572 = vpop.f32.mrb[0].mxu0
        %v573 = vadd.f32 %v470, %v572
        %574 = vdwg.mxu0
        %v575 = vand.u32 %v454, 4294901760
        %v576 = vsub.f32 %v454, %v575
        %v577 = vand.u32 %v576, 4294901760
        %v578 = vsub.f32 %v576, %v577
        %v579 = vand.u32 %v578, 4294901760
        %580 = vmatprep.subr.mxu0 %v579
        %v581 = vand.u32 %v453, 4294901760
        %v582 = vsub.f32 %v453, %v581
        %v583 = vand.u32 %v582, 4294901760
        %v584 = vsub.f32 %v582, %v583
        %v585 = vand.u32 %v584, 4294901760
        %586 = vmatpush1.msra.mxu0 %v585
        %v587 = vand.u32 %v456, 4294901760
        %v588 = vsub.f32 %v456, %v587
        %v589 = vand.u32 %v588, 4294901760
        %v590 = vsub.f32 %v588, %v589
        %v591 = vand.u32 %v590, 4294901760
        %592 = vmatprep.subr.mxu0 %v591
        %v593 = vand.u32 %v455, 4294901760
        %v594 = vsub.f32 %v455, %v593
        %v595 = vand.u32 %v594, 4294901760
        %v596 = vsub.f32 %v594, %v595
        %v597 = vand.u32 %v596, 4294901760
        %598 = vmatpush1.msra.mxu0 %v597
        %v599 = vand.u32 %v458, 4294901760
        %v600 = vsub.f32 %v458, %v599
        %v601 = vand.u32 %v600, 4294901760
        %v602 = vsub.f32 %v600, %v601
        %v603 = vand.u32 %v602, 4294901760
        %604 = vmatprep.subr.mxu0 %v603
        %v605 = vand.u32 %v457, 4294901760
        %v606 = vsub.f32 %v457, %v605
        %v607 = vand.u32 %v606, 4294901760
        %v608 = vsub.f32 %v606, %v607
        %v609 = vand.u32 %v608, 4294901760
        %610 = vmatpush1.msra.mxu0 %v609
        %v611 = vand.u32 %v460, 4294901760
        %v612 = vsub.f32 %v460, %v611
        %v613 = vand.u32 %v612, 4294901760
        %v614 = vsub.f32 %v612, %v613
        %v615 = vand.u32 %v614, 4294901760
        %616 = vmatprep.subr.mxu0 %v615
        %v617 = vand.u32 %v459, 4294901760
        %v618 = vsub.f32 %v459, %v617
        %v619 = vand.u32 %v618, 4294901760
        %v620 = vsub.f32 %v618, %v619
        %v621 = vand.u32 %v620, 4294901760
        %622 = vmatpush1.msra.mxu0 %v621
        %623 = vmatprep.subr.mxu0 0.0
        %624 = vmatpush1.msra.mxu0 0.0
        %625 = vmatprep.subr.mxu0 0.0
        %626 = vmatpush1.msra.mxu0 0.0
        %627 = vmatprep.subr.mxu0 0.0
        %628 = vmatpush1.msra.mxu0 0.0
        %629 = vmatprep.subr.mxu0 0.0
        %630 = vmatpush1.msra.mxu0 0.0
        %631 = vmatprep.subr.mxu0 0.0
        %632 = vmatpush1.msra.mxu0 0.0
        %633 = vmatprep.subr.mxu0 0.0
        %634 = vmatpush1.msra.mxu0 0.0
        %635 = vmatprep.subr.mxu0 0.0
        %636 = vmatpush1.msra.mxu0 0.0
        %637 = vmatprep.subr.mxu0 0.0
        %638 = vmatpush1.msra.mxu0 0.0
        %639 = vmatprep.subr.mxu0 0.0
        %640 = vmatpush1.msra.mxu0 0.0
        %641 = vmatprep.subr.mxu0 0.0
        %642 = vmatpush1.msra.mxu0 0.0
        %643 = vmatprep.subr.mxu0 0.0
        %644 = vmatpush1.msra.mxu0 0.0
        %645 = vmatprep.subr.mxu0 0.0
        %646 = vmatpush1.msra.mxu0 0.0
        %647 = vmatprep.subr.mxu0 0.0
        %648 = vmatpush1.msra.mxu0 0.0
        %649 = vmatprep.subr.mxu0 0.0
        %650 = vmatpush1.msra.mxu0 0.0
        %651 = vmatprep.subr.mxu0 0.0
        %652 = vmatpush1.msra.mxu0 0.0
        %653 = vmatprep.subr.mxu0 0.0
        %654 = vmatpush1.msra.mxu0 0.0
        %655 = vmatprep.subr.mxu0 0.0
        %656 = vmatpush1.msra.mxu0 0.0
        %657 = vmatprep.subr.mxu0 0.0
        %658 = vmatpush1.msra.mxu0 0.0
        %659 = vmatprep.subr.mxu0 0.0
        %660 = vmatpush1.msra.mxu0 0.0
        %661 = vmatprep.subr.mxu0 0.0
        %662 = vmatpush1.msra.mxu0 0.0
        %663 = vmatprep.subr.mxu0 0.0
        %664 = vmatpush1.msra.mxu0 0.0
        %665 = vmatprep.subr.mxu0 0.0
        %666 = vmatpush1.msra.mxu0 0.0
        %667 = vmatprep.subr.mxu0 0.0
        %668 = vmatpush1.msra.mxu0 0.0
        %669 = vmatprep.subr.mxu0 0.0
        %670 = vmatpush1.msra.mxu0 0.0
        %671 = vmatprep.subr.mxu0 0.0
        %672 = vmatpush1.msra.mxu0 0.0
        %673 = vmatprep.subr.mxu0 0.0
        %674 = vmatpush1.msra.mxu0 0.0
        %675 = vmatprep.subr.mxu0 0.0
        %676 = vmatpush1.msra.mxu0 0.0
        %677 = vmatprep.subr.mxu0 0.0
        %678 = vmatpush1.msra.mxu0 0.0
        %679 = vmatprep.mubr.f32.mxu0 0.0
        %v680 = vand.u32 %v475, 4294901760
        %681 = vmatmul.mubr.f32.gmra.mrb[0].mxu0 %v680
        %v682 = vpop.f32.mrb[0].mxu0
        %v683 = vadd.f32 %v560, %v682
        %v684 = vpop.f32.mrb[0].mxu0
        %v685 = vadd.f32 %v562, %v684
        %686 = vmatprep.mubr.f32.mxu0 0.0
        %v687 = vand.u32 %v478, 4294901760
        %688 = vmatmul.mubr.f32.gmra.mrb[0].mxu0 %v687
        %v689 = vpop.f32.mrb[0].mxu0
        %v690 = vadd.f32 %v571, %v689
        %v691 = vpop.f32.mrb[0].mxu0
        %v692 = vadd.f32 %v573, %v691
        %693 = vdwg.mxu0
        %v694 = vand.u32 %v454, 4294901760
        %v695 = vsub.f32 %v454, %v694
        %696 = vmatprep.subr.mxu0 %v695
        %v697 = vand.u32 %v453, 4294901760
        %v698 = vsub.f32 %v453, %v697
        %699 = vmatpush1.msra.mxu0 %v698
        %v700 = vand.u32 %v456, 4294901760
        %v701 = vsub.f32 %v456, %v700
        %702 = vmatprep.subr.mxu0 %v701
        %v703 = vand.u32 %v455, 4294901760
        %v704 = vsub.f32 %v455, %v703
        %705 = vmatpush1.msra.mxu0 %v704
        %v706 = vand.u32 %v458, 4294901760
        %v707 = vsub.f32 %v458, %v706
        %708 = vmatprep.subr.mxu0 %v707
        %v709 = vand.u32 %v457, 4294901760
        %v710 = vsub.f32 %v457, %v709
        %711 = vmatpush1.msra.mxu0 %v710
        %v712 = vand.u32 %v460, 4294901760
        %v713 = vsub.f32 %v460, %v712
        %714 = vmatprep.subr.mxu0 %v713
        %v715 = vand.u32 %v459, 4294901760
        %v716 = vsub.f32 %v459, %v715
        %717 = vmatpush1.msra.mxu0 %v716
        %718 = vmatprep.subr.mxu0 0.0
        %719 = vmatpush1.msra.mxu0 0.0
        %720 = vmatprep.subr.mxu0 0.0
        %721 = vmatpush1.msra.mxu0 0.0
        %722 = vmatprep.subr.mxu0 0.0
        %723 = vmatpush1.msra.mxu0 0.0
        %724 = vmatprep.subr.mxu0 0.0
        %725 = vmatpush1.msra.mxu0 0.0
        %726 = vmatprep.subr.mxu0 0.0
        %727 = vmatpush1.msra.mxu0 0.0
        %728 = vmatprep.subr.mxu0 0.0
        %729 = vmatpush1.msra.mxu0 0.0
        %730 = vmatprep.subr.mxu0 0.0
        %731 = vmatpush1.msra.mxu0 0.0
        %732 = vmatprep.subr.mxu0 0.0
        %733 = vmatpush1.msra.mxu0 0.0
        %734 = vmatprep.subr.mxu0 0.0
        %735 = vmatpush1.msra.mxu0 0.0
        %736 = vmatprep.subr.mxu0 0.0
        %737 = vmatpush1.msra.mxu0 0.0
        %738 = vmatprep.subr.mxu0 0.0
        %739 = vmatpush1.msra.mxu0 0.0
        %740 = vmatprep.subr.mxu0 0.0
        %741 = vmatpush1.msra.mxu0 0.0
        %742 = vmatprep.subr.mxu0 0.0
        %743 = vmatpush1.msra.mxu0 0.0
        %744 = vmatprep.subr.mxu0 0.0
        %745 = vmatpush1.msra.mxu0 0.0
        %746 = vmatprep.subr.mxu0 0.0
        %747 = vmatpush1.msra.mxu0 0.0
        %748 = vmatprep.subr.mxu0 0.0
        %749 = vmatpush1.msra.mxu0 0.0
        %750 = vmatprep.subr.mxu0 0.0
        %751 = vmatpush1.msra.mxu0 0.0
        %752 = vmatprep.subr.mxu0 0.0
        %753 = vmatpush1.msra.mxu0 0.0
        %754 = vmatprep.subr.mxu0 0.0
        %755 = vmatpush1.msra.mxu0 0.0
        %756 = vmatprep.subr.mxu0 0.0
        %757 = vmatpush1.msra.mxu0 0.0
        %758 = vmatprep.subr.mxu0 0.0
        %759 = vmatpush1.msra.mxu0 0.0
        %760 = vmatprep.subr.mxu0 0.0
        %761 = vmatpush1.msra.mxu0 0.0
        %762 = vmatprep.subr.mxu0 0.0
        %763 = vmatpush1.msra.mxu0 0.0
        %764 = vmatprep.subr.mxu0 0.0
        %765 = vmatpush1.msra.mxu0 0.0
        %766 = vmatprep.subr.mxu0 0.0
        %767 = vmatpush1.msra.mxu0 0.0
        %768 = vmatprep.subr.mxu0 0.0
        %769 = vmatpush1.msra.mxu0 0.0
        %770 = vmatprep.subr.mxu0 0.0
        %771 = vmatpush1.msra.mxu0 0.0
        %772 = vmatprep.subr.mxu0 0.0
        %773 = vmatpush1.msra.mxu0 0.0
        %774 = vmatprep.mubr.f32.mxu0 0.0
        %v775 = vand.u32 %v475, 4294901760
        %v776 = vsub.f32 %v475, %v775
        %777 = vmatmul.mubr.f32.gmra.mrb[0].mxu0 %v776
        %v778 = vpop.f32.mrb[0].mxu0
        %v779 = vadd.f32 %v683, %v778
        %v780 = vpop.f32.mrb[0].mxu0
        %v781 = vadd.f32 %v685, %v780
        %782 = vmatprep.mubr.f32.mxu0 0.0
        %v783 = vand.u32 %v478, 4294901760
        %v784 = vsub.f32 %v478, %v783
        %785 = vmatmul.mubr.f32.gmra.mrb[0].mxu0 %v784
        %v786 = vpop.f32.mrb[0].mxu0
        %v787 = vadd.f32 %v690, %v786
        %v788 = vpop.f32.mrb[0].mxu0
        %v789 = vadd.f32 %v692, %v788
        %790 = vdwg.mxu0
        %v791 = vand.u32 %v454, 4294901760
        %792 = vmatprep.subr.mxu0 %v791
        %v793 = vand.u32 %v453, 4294901760
        %794 = vmatpush1.msra.mxu0 %v793
        %v795 = vand.u32 %v456, 4294901760
        %796 = vmatprep.subr.mxu0 %v795
        %v797 = vand.u32 %v455, 4294901760
        %798 = vmatpush1.msra.mxu0 %v797
        %v799 = vand.u32 %v458, 4294901760
        %800 = vmatprep.subr.mxu0 %v799
        %v801 = vand.u32 %v457, 4294901760
        %802 = vmatpush1.msra.mxu0 %v801
        %v803 = vand.u32 %v460, 4294901760
        %804 = vmatprep.subr.mxu0 %v803
        %v805 = vand.u32 %v459, 4294901760
        %806 = vmatpush1.msra.mxu0 %v805
        %807 = vmatprep.subr.mxu0 0.0
        %808 = vmatpush1.msra.mxu0 0.0
        %809 = vmatprep.subr.mxu0 0.0
        %810 = vmatpush1.msra.mxu0 0.0
        %811 = vmatprep.subr.mxu0 0.0
        %812 = vmatpush1.msra.mxu0 0.0
        %813 = vmatprep.subr.mxu0 0.0
        %814 = vmatpush1.msra.mxu0 0.0
        %815 = vmatprep.subr.mxu0 0.0
        %816 = vmatpush1.msra.mxu0 0.0
        %817 = vmatprep.subr.mxu0 0.0
        %818 = vmatpush1.msra.mxu0 0.0
        %819 = vmatprep.subr.mxu0 0.0
        %820 = vmatpush1.msra.mxu0 0.0
        %821 = vmatprep.subr.mxu0 0.0
        %822 = vmatpush1.msra.mxu0 0.0
        %823 = vmatprep.subr.mxu0 0.0
        %824 = vmatpush1.msra.mxu0 0.0
        %825 = vmatprep.subr.mxu0 0.0
        %826 = vmatpush1.msra.mxu0 0.0
        %827 = vmatprep.subr.mxu0 0.0
        %828 = vmatpush1.msra.mxu0 0.0
        %829 = vmatprep.subr.mxu0 0.0
        %830 = vmatpush1.msra.mxu0 0.0
        %831 = vmatprep.subr.mxu0 0.0
        %832 = vmatpush1.msra.mxu0 0.0
        %833 = vmatprep.subr.mxu0 0.0
        %834 = vmatpush1.msra.mxu0 0.0
        %835 = vmatprep.subr.mxu0 0.0
        %836 = vmatpush1.msra.mxu0 0.0
        %837 = vmatprep.subr.mxu0 0.0
        %838 = vmatpush1.msra.mxu0 0.0
        %839 = vmatprep.subr.mxu0 0.0
        %840 = vmatpush1.msra.mxu0 0.0
        %841 = vmatprep.subr.mxu0 0.0
        %842 = vmatpush1.msra.mxu0 0.0
        %843 = vmatprep.subr.mxu0 0.0
        %844 = vmatpush1.msra.mxu0 0.0
        %845 = vmatprep.subr.mxu0 0.0
        %846 = vmatpush1.msra.mxu0 0.0
        %847 = vmatprep.subr.mxu0 0.0
        %848 = vmatpush1.msra.mxu0 0.0
        %849 = vmatprep.subr.mxu0 0.0
        %850 = vmatpush1.msra.mxu0 0.0
        %851 = vmatprep.subr.mxu0 0.0
        %852 = vmatpush1.msra.mxu0 0.0
        %853 = vmatprep.subr.mxu0 0.0
        %854 = vmatpush1.msra.mxu0 0.0
        %855 = vmatprep.subr.mxu0 0.0
        %856 = vmatpush1.msra.mxu0 0.0
        %857 = vmatprep.subr.mxu0 0.0
        %858 = vmatpush1.msra.mxu0 0.0
        %859 = vmatprep.subr.mxu0 0.0
        %860 = vmatpush1.msra.mxu0 0.0
        %861 = vmatprep.subr.mxu0 0.0
        %862 = vmatpush1.msra.mxu0 0.0
        %863 = vmatprep.mubr.f32.mxu0 0.0
        %v864 = vand.u32 %v475, 4294901760
        %v865 = vsub.f32 %v475, %v864
        %v866 = vand.u32 %v865, 4294901760
        %867 = vmatmul.mubr.f32.gmra.mrb[0].mxu0 %v866
        %v868 = vpop.f32.mrb[0].mxu0
        %v869 = vadd.f32 %v779, %v868
        %v870 = vpop.f32.mrb[0].mxu0
        %v871 = vadd.f32 %v781, %v870
        %872 = vmatprep.mubr.f32.mxu0 0.0
        %v873 = vand.u32 %v478, 4294901760
        %v874 = vsub.f32 %v478, %v873
        %v875 = vand.u32 %v874, 4294901760
        %876 = vmatmul.mubr.f32.gmra.mrb[0].mxu0 %v875
        %v877 = vpop.f32.mrb[0].mxu0
        %v878 = vadd.f32 %v787, %v877
        %v879 = vpop.f32.mrb[0].mxu0
        %v880 = vadd.f32 %v789, %v879
        %881 = vdwg.mxu0
        %v882 = vand.u32 %v454, 4294901760
        %v883 = vsub.f32 %v454, %v882
        %v884 = vand.u32 %v883, 4294901760
        %885 = vmatprep.subr.mxu0 %v884
        %v886 = vand.u32 %v453, 4294901760
        %v887 = vsub.f32 %v453, %v886
        %v888 = vand.u32 %v887, 4294901760
        %889 = vmatpush1.msra.mxu0 %v888
        %v890 = vand.u32 %v456, 4294901760
        %v891 = vsub.f32 %v456, %v890
        %v892 = vand.u32 %v891, 4294901760
        %893 = vmatprep.subr.mxu0 %v892
        %v894 = vand.u32 %v455, 4294901760
        %v895 = vsub.f32 %v455, %v894
        %v896 = vand.u32 %v895, 4294901760
        %897 = vmatpush1.msra.mxu0 %v896
        %v898 = vand.u32 %v458, 4294901760
        %v899 = vsub.f32 %v458, %v898
        %v900 = vand.u32 %v899, 4294901760
        %901 = vmatprep.subr.mxu0 %v900
        %v902 = vand.u32 %v457, 4294901760
        %v903 = vsub.f32 %v457, %v902
        %v904 = vand.u32 %v903, 4294901760
        %905 = vmatpush1.msra.mxu0 %v904
        %v906 = vand.u32 %v460, 4294901760
        %v907 = vsub.f32 %v460, %v906
        %v908 = vand.u32 %v907, 4294901760
        %909 = vmatprep.subr.mxu0 %v908
        %v910 = vand.u32 %v459, 4294901760
        %v911 = vsub.f32 %v459, %v910
        %v912 = vand.u32 %v911, 4294901760
        %913 = vmatpush1.msra.mxu0 %v912
        %914 = vmatprep.subr.mxu0 0.0
        %915 = vmatpush1.msra.mxu0 0.0
        %916 = vmatprep.subr.mxu0 0.0
        %917 = vmatpush1.msra.mxu0 0.0
        %918 = vmatprep.subr.mxu0 0.0
        %919 = vmatpush1.msra.mxu0 0.0
        %920 = vmatprep.subr.mxu0 0.0
        %921 = vmatpush1.msra.mxu0 0.0
        %922 = vmatprep.subr.mxu0 0.0
        %923 = vmatpush1.msra.mxu0 0.0
        %924 = vmatprep.subr.mxu0 0.0
        %925 = vmatpush1.msra.mxu0 0.0
        %926 = vmatprep.subr.mxu0 0.0
        %927 = vmatpush1.msra.mxu0 0.0
        %928 = vmatprep.subr.mxu0 0.0
        %929 = vmatpush1.msra.mxu0 0.0
        %930 = vmatprep.subr.mxu0 0.0
        %931 = vmatpush1.msra.mxu0 0.0
        %932 = vmatprep.subr.mxu0 0.0
        %933 = vmatpush1.msra.mxu0 0.0
        %934 = vmatprep.subr.mxu0 0.0
        %935 = vmatpush1.msra.mxu0 0.0
        %936 = vmatprep.subr.mxu0 0.0
        %937 = vmatpush1.msra.mxu0 0.0
        %938 = vmatprep.subr.mxu0 0.0
        %939 = vmatpush1.msra.mxu0 0.0
        %940 = vmatprep.subr.mxu0 0.0
        %941 = vmatpush1.msra.mxu0 0.0
        %942 = vmatprep.subr.mxu0 0.0
        %943 = vmatpush1.msra.mxu0 0.0
        %944 = vmatprep.subr.mxu0 0.0
        %945 = vmatpush1.msra.mxu0 0.0
        %946 = vmatprep.subr.mxu0 0.0
        %947 = vmatpush1.msra.mxu0 0.0
        %948 = vmatprep.subr.mxu0 0.0
        %949 = vmatpush1.msra.mxu0 0.0
        %950 = vmatprep.subr.mxu0 0.0
        %951 = vmatpush1.msra.mxu0 0.0
        %952 = vmatprep.subr.mxu0 0.0
        %953 = vmatpush1.msra.mxu0 0.0
        %954 = vmatprep.subr.mxu0 0.0
        %955 = vmatpush1.msra.mxu0 0.0
        %956 = vmatprep.subr.mxu0 0.0
        %957 = vmatpush1.msra.mxu0 0.0
        %958 = vmatprep.subr.mxu0 0.0
        %959 = vmatpush1.msra.mxu0 0.0
        %960 = vmatprep.subr.mxu0 0.0
        %961 = vmatpush1.msra.mxu0 0.0
        %962 = vmatprep.subr.mxu0 0.0
        %963 = vmatpush1.msra.mxu0 0.0
        %964 = vmatprep.subr.mxu0 0.0
        %965 = vmatpush1.msra.mxu0 0.0
        %966 = vmatprep.subr.mxu0 0.0
        %967 = vmatpush1.msra.mxu0 0.0
        %968 = vmatprep.subr.mxu0 0.0
        %969 = vmatpush1.msra.mxu0 0.0
        %970 = vmatprep.mubr.f32.mxu0 0.0
        %v971 = vand.u32 %v475, 4294901760
        %972 = vmatmul.mubr.f32.gmra.mrb[0].mxu0 %v971
        %v973 = vpop.f32.mrb[0].mxu0
        %v974 = vadd.f32 %v869, %v973
        %v975 = vpop.f32.mrb[0].mxu0
        %v976 = vadd.f32 %v871, %v975
        %977 = vmatprep.mubr.f32.mxu0 0.0
        %v978 = vand.u32 %v478, 4294901760
        %979 = vmatmul.mubr.f32.gmra.mrb[0].mxu0 %v978
        %v980 = vpop.f32.mrb[0].mxu0
        %v981 = vadd.f32 %v878, %v980
        %v982 = vpop.f32.mrb[0].mxu0
        %v983 = vadd.f32 %v880, %v982
        %984 = vdwg.mxu0
        %v985 = vand.u32 %v454, 4294901760
        %986 = vmatprep.subr.mxu0 %v985
        %v987 = vand.u32 %v453, 4294901760
        %988 = vmatpush1.msra.mxu0 %v987
        %v989 = vand.u32 %v456, 4294901760
        %990 = vmatprep.subr.mxu0 %v989
        %v991 = vand.u32 %v455, 4294901760
        %992 = vmatpush1.msra.mxu0 %v991
        %v993 = vand.u32 %v458, 4294901760
        %994 = vmatprep.subr.mxu0 %v993
        %v995 = vand.u32 %v457, 4294901760
        %996 = vmatpush1.msra.mxu0 %v995
        %v997 = vand.u32 %v460, 4294901760
        %998 = vmatprep.subr.mxu0 %v997
        %v999 = vand.u32 %v459, 4294901760
        %1000 = vmatpush1.msra.mxu0 %v999
        %1001 = vmatprep.subr.mxu0 0.0
        %1002 = vmatpush1.msra.mxu0 0.0
        %1003 = vmatprep.subr.mxu0 0.0
        %1004 = vmatpush1.msra.mxu0 0.0
        %1005 = vmatprep.subr.mxu0 0.0
        %1006 = vmatpush1.msra.mxu0 0.0
        %1007 = vmatprep.subr.mxu0 0.0
        %1008 = vmatpush1.msra.mxu0 0.0
        %1009 = vmatprep.subr.mxu0 0.0
        %1010 = vmatpush1.msra.mxu0 0.0
        %1011 = vmatprep.subr.mxu0 0.0
        %1012 = vmatpush1.msra.mxu0 0.0
        %1013 = vmatprep.subr.mxu0 0.0
        %1014 = vmatpush1.msra.mxu0 0.0
        %1015 = vmatprep.subr.mxu0 0.0
        %1016 = vmatpush1.msra.mxu0 0.0
        %1017 = vmatprep.subr.mxu0 0.0
        %1018 = vmatpush1.msra.mxu0 0.0
        %1019 = vmatprep.subr.mxu0 0.0
        %1020 = vmatpush1.msra.mxu0 0.0
        %1021 = vmatprep.subr.mxu0 0.0
        %1022 = vmatpush1.msra.mxu0 0.0
        %1023 = vmatprep.subr.mxu0 0.0
        %1024 = vmatpush1.msra.mxu0 0.0
        %1025 = vmatprep.subr.mxu0 0.0
        %1026 = vmatpush1.msra.mxu0 0.0
        %1027 = vmatprep.subr.mxu0 0.0
        %1028 = vmatpush1.msra.mxu0 0.0
        %1029 = vmatprep.subr.mxu0 0.0
        %1030 = vmatpush1.msra.mxu0 0.0
        %1031 = vmatprep.subr.mxu0 0.0
        %1032 = vmatpush1.msra.mxu0 0.0
        %1033 = vmatprep.subr.mxu0 0.0
        %1034 = vmatpush1.msra.mxu0 0.0
        %1035 = vmatprep.subr.mxu0 0.0
        %1036 = vmatpush1.msra.mxu0 0.0
        %1037 = vmatprep.subr.mxu0 0.0
        %1038 = vmatpush1.msra.mxu0 0.0
        %1039 = vmatprep.subr.mxu0 0.0
        %1040 = vmatpush1.msra.mxu0 0.0
        %1041 = vmatprep.subr.mxu0 0.0
        %1042 = vmatpush1.msra.mxu0 0.0
        %1043 = vmatprep.subr.mxu0 0.0
        %1044 = vmatpush1.msra.mxu0 0.0
        %1045 = vmatprep.subr.mxu0 0.0
        %1046 = vmatpush1.msra.mxu0 0.0
        %1047 = vmatprep.subr.mxu0 0.0
        %1048 = vmatpush1.msra.mxu0 0.0
        %1049 = vmatprep.subr.mxu0 0.0
        %1050 = vmatpush1.msra.mxu0 0.0
        %1051 = vmatprep.subr.mxu0 0.0
        %1052 = vmatpush1.msra.mxu0 0.0
        %1053 = vmatprep.subr.mxu0 0.0
        %1054 = vmatpush1.msra.mxu0 0.0
        %1055 = vmatprep.subr.mxu0 0.0
        %1056 = vmatpush1.msra.mxu0 0.0
        %1057 = vmatprep.mubr.f32.mxu0 0.0
        %v1058 = vand.u32 %v475, 4294901760
        %1059 = vmatmul.mubr.f32.gmra.mrb[0].mxu0 %v1058
        %v1060 = vpop.f32.mrb[0].mxu0
        %v1061 = vadd.f32 %v974, %v1060
        %v1062 = vpop.f32.mrb[0].mxu0
        %v1063 = vadd.f32 %v976, %v1062
        %1064 = vmatprep.mubr.f32.mxu0 0.0
        %v1065 = vand.u32 %v478, 4294901760
        %1066 = vmatmul.mubr.f32.gmra.mrb[0].mxu0 %v1065
        %v1067 = vpop.f32.mrb[0].mxu0
        %v1068 = vadd.f32 %v981, %v1067
        %v1069 = vpop.f32.mrb[0].mxu0
        %v1070 = vadd.f32 %v983, %v1069
        %1071 = vdwg.mxu0
        %v1072 = vld [vmem:[%s440] sm:$0xff]
        %v1073 = vld [vmem:[%s440 + $0x8] sm:$0xff]
        %v1074 = vld [vmem:[#allocation5] sm:$0xff]
        %v1075 = vld [vmem:[#allocation5 + $0x8] sm:$0xff]
        %vm1076 = vcmask 130048
        %v1078 = vsel %vm1076, %v1072, 0
        %v1081 = vsel %vm1076, %v1073, 0
        %1083 = vmatprep.subr.mxu0 0.0
        %v1084 = vand.u32 %v1074, 4294901760
        %1085 = vmatpush1.msra.mxu0 %v1084
        %1086 = vmatprep.subr.mxu0 0.0
        %v1087 = vand.u32 %v1075, 4294901760
        %1088 = vmatpush1.msra.mxu0 %v1087
        %1089 = vmatprep.subr.mxu0 0.0
        %1090 = vmatpush1.msra.mxu0 0.0
        %1091 = vmatprep.subr.mxu0 0.0
        %1092 = vmatpush1.msra.mxu0 0.0
        %1093 = vmatprep.subr.mxu0 0.0
        %1094 = vmatpush1.msra.mxu0 0.0
        %1095 = vmatprep.subr.mxu0 0.0
        %1096 = vmatpush1.msra.mxu0 0.0
        %1097 = vmatprep.subr.mxu0 0.0
        %1098 = vmatpush1.msra.mxu0 0.0
        %1099 = vmatprep.subr.mxu0 0.0
        %1100 = vmatpush1.msra.mxu0 0.0
        %1101 = vmatprep.subr.mxu0 0.0
        %1102 = vmatpush1.msra.mxu0 0.0
        %1103 = vmatprep.subr.mxu0 0.0
        %1104 = vmatpush1.msra.mxu0 0.0
        %1105 = vmatprep.subr.mxu0 0.0
        %1106 = vmatpush1.msra.mxu0 0.0
        %1107 = vmatprep.subr.mxu0 0.0
        %1108 = vmatpush1.msra.mxu0 0.0
        %1109 = vmatprep.subr.mxu0 0.0
        %1110 = vmatpush1.msra.mxu0 0.0
        %1111 = vmatprep.subr.mxu0 0.0
        %1112 = vmatpush1.msra.mxu0 0.0
        %1113 = vmatprep.subr.mxu0 0.0
        %1114 = vmatpush1.msra.mxu0 0.0
        %1115 = vmatprep.subr.mxu0 0.0
        %1116 = vmatpush1.msra.mxu0 0.0
        %1117 = vmatprep.subr.mxu0 0.0
        %1118 = vmatpush1.msra.mxu0 0.0
        %1119 = vmatprep.subr.mxu0 0.0
        %1120 = vmatpush1.msra.mxu0 0.0
        %1121 = vmatprep.subr.mxu0 0.0
        %1122 = vmatpush1.msra.mxu0 0.0
        %1123 = vmatprep.subr.mxu0 0.0
        %1124 = vmatpush1.msra.mxu0 0.0
        %1125 = vmatprep.subr.mxu0 0.0
        %1126 = vmatpush1.msra.mxu0 0.0
        %1127 = vmatprep.subr.mxu0 0.0
        %1128 = vmatpush1.msra.mxu0 0.0
        %1129 = vmatprep.subr.mxu0 0.0
        %1130 = vmatpush1.msra.mxu0 0.0
        %1131 = vmatprep.subr.mxu0 0.0
        %1132 = vmatpush1.msra.mxu0 0.0
        %1133 = vmatprep.subr.mxu0 0.0
        %1134 = vmatpush1.msra.mxu0 0.0
        %1135 = vmatprep.subr.mxu0 0.0
        %1136 = vmatpush1.msra.mxu0 0.0
        %1137 = vmatprep.subr.mxu0 0.0
        %1138 = vmatpush1.msra.mxu0 0.0
        %1139 = vmatprep.subr.mxu0 0.0
        %1140 = vmatpush1.msra.mxu0 0.0
        %1141 = vmatprep.subr.mxu0 0.0
        %1142 = vmatpush1.msra.mxu0 0.0
        %1143 = vmatprep.subr.mxu0 0.0
        %1144 = vmatpush1.msra.mxu0 0.0
        %1145 = vmatprep.subr.mxu0 0.0
        %1146 = vmatpush1.msra.mxu0 0.0
        %1147 = vmatprep.subr.mxu0 0.0
        %1148 = vmatpush1.msra.mxu0 0.0
        %1149 = vmatprep.mubr.f32.mxu0 0.0
        %v1150 = vand.u32 %v1078, 4294901760
        %v1151 = vsub.f32 %v1078, %v1150
        %v1152 = vand.u32 %v1151, 4294901760
        %v1153 = vsub.f32 %v1151, %v1152
        %v1154 = vand.u32 %v1153, 4294901760
        %1155 = vmatmul.mubr.f32.gmra.mrb[0].mxu0 %v1154
        %v1156 = vpop.f32.mrb[0].mxu0
        %v1157 = vadd.f32 0.0, %v1156
        %v1158 = vpop.f32.mrb[0].mxu0
        %1159 = vmatprep.mubr.f32.mxu0 0.0
        %v1160 = vand.u32 %v1081, 4294901760
        %v1161 = vsub.f32 %v1081, %v1160
        %v1162 = vand.u32 %v1161, 4294901760
        %v1163 = vsub.f32 %v1161, %v1162
        %v1164 = vand.u32 %v1163, 4294901760
        %1165 = vmatmul.mubr.f32.gmra.mrb[0].mxu0 %v1164
        %v1166 = vpop.f32.mrb[0].mxu0
        %v1167 = vadd.f32 0.0, %v1166
        %v1168 = vpop.f32.mrb[0].mxu0
        %1169 = vdwg.mxu0
        %1170 = vmatprep.subr.mxu0 0.0
        %v1171 = vand.u32 %v1074, 4294901760
        %v1172 = vsub.f32 %v1074, %v1171
        %v1173 = vand.u32 %v1172, 4294901760
        %v1174 = vsub.f32 %v1172, %v1173
        %v1175 = vand.u32 %v1174, 4294901760
        %1176 = vmatpush1.msra.mxu0 %v1175
        %1177 = vmatprep.subr.mxu0 0.0
        %v1178 = vand.u32 %v1075, 4294901760
        %v1179 = vsub.f32 %v1075, %v1178
        %v1180 = vand.u32 %v1179, 4294901760
        %v1181 = vsub.f32 %v1179, %v1180
        %v1182 = vand.u32 %v1181, 4294901760
        %1183 = vmatpush1.msra.mxu0 %v1182
        %1184 = vmatprep.subr.mxu0 0.0
        %1185 = vmatpush1.msra.mxu0 0.0
        %1186 = vmatprep.subr.mxu0 0.0
        %1187 = vmatpush1.msra.mxu0 0.0
        %1188 = vmatprep.subr.mxu0 0.0
        %1189 = vmatpush1.msra.mxu0 0.0
        %1190 = vmatprep.subr.mxu0 0.0
        %1191 = vmatpush1.msra.mxu0 0.0
        %1192 = vmatprep.subr.mxu0 0.0
        %1193 = vmatpush1.msra.mxu0 0.0
        %1194 = vmatprep.subr.mxu0 0.0
        %1195 = vmatpush1.msra.mxu0 0.0
        %1196 = vmatprep.subr.mxu0 0.0
        %1197 = vmatpush1.msra.mxu0 0.0
        %1198 = vmatprep.subr.mxu0 0.0
        %1199 = vmatpush1.msra.mxu0 0.0
        %1200 = vmatprep.subr.mxu0 0.0
        %1201 = vmatpush1.msra.mxu0 0.0
        %1202 = vmatprep.subr.mxu0 0.0
        %1203 = vmatpush1.msra.mxu0 0.0
        %1204 = vmatprep.subr.mxu0 0.0
        %1205 = vmatpush1.msra.mxu0 0.0
        %1206 = vmatprep.subr.mxu0 0.0
        %1207 = vmatpush1.msra.mxu0 0.0
        %1208 = vmatprep.subr.mxu0 0.0
        %1209 = vmatpush1.msra.mxu0 0.0
        %1210 = vmatprep.subr.mxu0 0.0
        %1211 = vmatpush1.msra.mxu0 0.0
        %1212 = vmatprep.subr.mxu0 0.0
        %1213 = vmatpush1.msra.mxu0 0.0
        %1214 = vmatprep.subr.mxu0 0.0
        %1215 = vmatpush1.msra.mxu0 0.0
        %1216 = vmatprep.subr.mxu0 0.0
        %1217 = vmatpush1.msra.mxu0 0.0
        %1218 = vmatprep.subr.mxu0 0.0
        %1219 = vmatpush1.msra.mxu0 0.0
        %1220 = vmatprep.subr.mxu0 0.0
        %1221 = vmatpush1.msra.mxu0 0.0
        %1222 = vmatprep.subr.mxu0 0.0
        %1223 = vmatpush1.msra.mxu0 0.0
        %1224 = vmatprep.subr.mxu0 0.0
        %1225 = vmatpush1.msra.mxu0 0.0
        %1226 = vmatprep.subr.mxu0 0.0
        %1227 = vmatpush1.msra.mxu0 0.0
        %1228 = vmatprep.subr.mxu0 0.0
        %1229 = vmatpush1.msra.mxu0 0.0
        %1230 = vmatprep.subr.mxu0 0.0
        %1231 = vmatpush1.msra.mxu0 0.0
        %1232 = vmatprep.subr.mxu0 0.0
        %1233 = vmatpush1.msra.mxu0 0.0
        %1234 = vmatprep.subr.mxu0 0.0
        %1235 = vmatpush1.msra.mxu0 0.0
        %1236 = vmatprep.subr.mxu0 0.0
        %1237 = vmatpush1.msra.mxu0 0.0
        %1238 = vmatprep.subr.mxu0 0.0
        %1239 = vmatpush1.msra.mxu0 0.0
        %1240 = vmatprep.subr.mxu0 0.0
        %1241 = vmatpush1.msra.mxu0 0.0
        %1242 = vmatprep.subr.mxu0 0.0
        %1243 = vmatpush1.msra.mxu0 0.0
        %1244 = vmatprep.mubr.f32.mxu0 0.0
        %v1245 = vand.u32 %v1078, 4294901760
        %1246 = vmatmul.mubr.f32.gmra.mrb[0].mxu0 %v1245
        %v1247 = vpop.f32.mrb[0].mxu0
        %v1248 = vadd.f32 %v1157, %v1247
        %v1249 = vpop.f32.mrb[0].mxu0
        %1250 = vmatprep.mubr.f32.mxu0 0.0
        %v1251 = vand.u32 %v1081, 4294901760
        %1252 = vmatmul.mubr.f32.gmra.mrb[0].mxu0 %v1251
        %v1253 = vpop.f32.mrb[0].mxu0
        %v1254 = vadd.f32 %v1167, %v1253
        %v1255 = vpop.f32.mrb[0].mxu0
        %1256 = vdwg.mxu0
        %1257 = vmatprep.subr.mxu0 0.0
        %v1258 = vand.u32 %v1074, 4294901760
        %v1259 = vsub.f32 %v1074, %v1258
        %1260 = vmatpush1.msra.mxu0 %v1259
        %1261 = vmatprep.subr.mxu0 0.0
        %v1262 = vand.u32 %v1075, 4294901760
        %v1263 = vsub.f32 %v1075, %v1262
        %1264 = vmatpush1.msra.mxu0 %v1263
        %1265 = vmatprep.subr.mxu0 0.0
        %1266 = vmatpush1.msra.mxu0 0.0
        %1267 = vmatprep.subr.mxu0 0.0
        %1268 = vmatpush1.msra.mxu0 0.0
        %1269 = vmatprep.subr.mxu0 0.0
        %1270 = vmatpush1.msra.mxu0 0.0
        %1271 = vmatprep.subr.mxu0 0.0
        %1272 = vmatpush1.msra.mxu0 0.0
        %1273 = vmatprep.subr.mxu0 0.0
        %1274 = vmatpush1.msra.mxu0 0.0
        %1275 = vmatprep.subr.mxu0 0.0
        %1276 = vmatpush1.msra.mxu0 0.0
        %1277 = vmatprep.subr.mxu0 0.0
        %1278 = vmatpush1.msra.mxu0 0.0
        %1279 = vmatprep.subr.mxu0 0.0
        %1280 = vmatpush1.msra.mxu0 0.0
        %1281 = vmatprep.subr.mxu0 0.0
        %1282 = vmatpush1.msra.mxu0 0.0
        %1283 = vmatprep.subr.mxu0 0.0
        %1284 = vmatpush1.msra.mxu0 0.0
        %1285 = vmatprep.subr.mxu0 0.0
        %1286 = vmatpush1.msra.mxu0 0.0
        %1287 = vmatprep.subr.mxu0 0.0
        %1288 = vmatpush1.msra.mxu0 0.0
        %1289 = vmatprep.subr.mxu0 0.0
        %1290 = vmatpush1.msra.mxu0 0.0
        %1291 = vmatprep.subr.mxu0 0.0
        %1292 = vmatpush1.msra.mxu0 0.0
        %1293 = vmatprep.subr.mxu0 0.0
        %1294 = vmatpush1.msra.mxu0 0.0
        %1295 = vmatprep.subr.mxu0 0.0
        %1296 = vmatpush1.msra.mxu0 0.0
        %1297 = vmatprep.subr.mxu0 0.0
        %1298 = vmatpush1.msra.mxu0 0.0
        %1299 = vmatprep.subr.mxu0 0.0
        %1300 = vmatpush1.msra.mxu0 0.0
        %1301 = vmatprep.subr.mxu0 0.0
        %1302 = vmatpush1.msra.mxu0 0.0
        %1303 = vmatprep.subr.mxu0 0.0
        %1304 = vmatpush1.msra.mxu0 0.0
        %1305 = vmatprep.subr.mxu0 0.0
        %1306 = vmatpush1.msra.mxu0 0.0
        %1307 = vmatprep.subr.mxu0 0.0
        %1308 = vmatpush1.msra.mxu0 0.0
        %1309 = vmatprep.subr.mxu0 0.0
        %1310 = vmatpush1.msra.mxu0 0.0
        %1311 = vmatprep.subr.mxu0 0.0
        %1312 = vmatpush1.msra.mxu0 0.0
        %1313 = vmatprep.subr.mxu0 0.0
        %1314 = vmatpush1.msra.mxu0 0.0
        %1315 = vmatprep.subr.mxu0 0.0
        %1316 = vmatpush1.msra.mxu0 0.0
        %1317 = vmatprep.subr.mxu0 0.0
        %1318 = vmatpush1.msra.mxu0 0.0
        %1319 = vmatprep.subr.mxu0 0.0
        %1320 = vmatpush1.msra.mxu0 0.0
        %1321 = vmatprep.subr.mxu0 0.0
        %1322 = vmatpush1.msra.mxu0 0.0
        %1323 = vmatprep.subr.mxu0 0.0
        %1324 = vmatpush1.msra.mxu0 0.0
        %1325 = vmatprep.mubr.f32.mxu0 0.0
        %v1326 = vand.u32 %v1078, 4294901760
        %v1327 = vsub.f32 %v1078, %v1326
        %1328 = vmatmul.mubr.f32.gmra.mrb[0].mxu0 %v1327
        %v1329 = vpop.f32.mrb[0].mxu0
        %v1330 = vadd.f32 %v1248, %v1329
        %v1331 = vpop.f32.mrb[0].mxu0
        %1332 = vmatprep.mubr.f32.mxu0 0.0
        %v1333 = vand.u32 %v1081, 4294901760
        %v1334 = vsub.f32 %v1081, %v1333
        %1335 = vmatmul.mubr.f32.gmra.mrb[0].mxu0 %v1334
        %v1336 = vpop.f32.mrb[0].mxu0
        %v1337 = vadd.f32 %v1254, %v1336
        %v1338 = vpop.f32.mrb[0].mxu0
        %1339 = vdwg.mxu0
        %1340 = vmatprep.subr.mxu0 0.0
        %v1341 = vand.u32 %v1074, 4294901760
        %1342 = vmatpush1.msra.mxu0 %v1341
        %1343 = vmatprep.subr.mxu0 0.0
        %v1344 = vand.u32 %v1075, 4294901760
        %1345 = vmatpush1.msra.mxu0 %v1344
        %1346 = vmatprep.subr.mxu0 0.0
        %1347 = vmatpush1.msra.mxu0 0.0
        %1348 = vmatprep.subr.mxu0 0.0
        %1349 = vmatpush1.msra.mxu0 0.0
        %1350 = vmatprep.subr.mxu0 0.0
        %1351 = vmatpush1.msra.mxu0 0.0
        %1352 = vmatprep.subr.mxu0 0.0
        %1353 = vmatpush1.msra.mxu0 0.0
        %1354 = vmatprep.subr.mxu0 0.0
        %1355 = vmatpush1.msra.mxu0 0.0
        %1356 = vmatprep.subr.mxu0 0.0
        %1357 = vmatpush1.msra.mxu0 0.0
        %1358 = vmatprep.subr.mxu0 0.0
        %1359 = vmatpush1.msra.mxu0 0.0
        %1360 = vmatprep.subr.mxu0 0.0
        %1361 = vmatpush1.msra.mxu0 0.0
        %1362 = vmatprep.subr.mxu0 0.0
        %1363 = vmatpush1.msra.mxu0 0.0
        %1364 = vmatprep.subr.mxu0 0.0
        %1365 = vmatpush1.msra.mxu0 0.0
        %1366 = vmatprep.subr.mxu0 0.0
        %1367 = vmatpush1.msra.mxu0 0.0
        %1368 = vmatprep.subr.mxu0 0.0
        %1369 = vmatpush1.msra.mxu0 0.0
        %1370 = vmatprep.subr.mxu0 0.0
        %1371 = vmatpush1.msra.mxu0 0.0
        %1372 = vmatprep.subr.mxu0 0.0
        %1373 = vmatpush1.msra.mxu0 0.0
        %1374 = vmatprep.subr.mxu0 0.0
        %1375 = vmatpush1.msra.mxu0 0.0
        %1376 = vmatprep.subr.mxu0 0.0
        %1377 = vmatpush1.msra.mxu0 0.0
        %1378 = vmatprep.subr.mxu0 0.0
        %1379 = vmatpush1.msra.mxu0 0.0
        %1380 = vmatprep.subr.mxu0 0.0
        %1381 = vmatpush1.msra.mxu0 0.0
        %1382 = vmatprep.subr.mxu0 0.0
        %1383 = vmatpush1.msra.mxu0 0.0
        %1384 = vmatprep.subr.mxu0 0.0
        %1385 = vmatpush1.msra.mxu0 0.0
        %1386 = vmatprep.subr.mxu0 0.0
        %1387 = vmatpush1.msra.mxu0 0.0
        %1388 = vmatprep.subr.mxu0 0.0
        %1389 = vmatpush1.msra.mxu0 0.0
        %1390 = vmatprep.subr.mxu0 0.0
        %1391 = vmatpush1.msra.mxu0 0.0
        %1392 = vmatprep.subr.mxu0 0.0
        %1393 = vmatpush1.msra.mxu0 0.0
        %1394 = vmatprep.subr.mxu0 0.0
        %1395 = vmatpush1.msra.mxu0 0.0
        %1396 = vmatprep.subr.mxu0 0.0
        %1397 = vmatpush1.msra.mxu0 0.0
        %1398 = vmatprep.subr.mxu0 0.0
        %1399 = vmatpush1.msra.mxu0 0.0
        %1400 = vmatprep.subr.mxu0 0.0
        %1401 = vmatpush1.msra.mxu0 0.0
        %1402 = vmatprep.subr.mxu0 0.0
        %1403 = vmatpush1.msra.mxu0 0.0
        %1404 = vmatprep.subr.mxu0 0.0
        %1405 = vmatpush1.msra.mxu0 0.0
        %1406 = vmatprep.mubr.f32.mxu0 0.0
        %v1407 = vand.u32 %v1078, 4294901760
        %v1408 = vsub.f32 %v1078, %v1407
        %v1409 = vand.u32 %v1408, 4294901760
        %1410 = vmatmul.mubr.f32.gmra.mrb[0].mxu0 %v1409
        %v1411 = vpop.f32.mrb[0].mxu0
        %v1412 = vadd.f32 %v1330, %v1411
        %v1413 = vpop.f32.mrb[0].mxu0
        %1414 = vmatprep.mubr.f32.mxu0 0.0
        %v1415 = vand.u32 %v1081, 4294901760
        %v1416 = vsub.f32 %v1081, %v1415
        %v1417 = vand.u32 %v1416, 4294901760
        %1418 = vmatmul.mubr.f32.gmra.mrb[0].mxu0 %v1417
        %v1419 = vpop.f32.mrb[0].mxu0
        %v1420 = vadd.f32 %v1337, %v1419
        %v1421 = vpop.f32.mrb[0].mxu0
        %1422 = vdwg.mxu0
        %1423 = vmatprep.subr.mxu0 0.0
        %v1424 = vand.u32 %v1074, 4294901760
        %v1425 = vsub.f32 %v1074, %v1424
        %v1426 = vand.u32 %v1425, 4294901760
        %1427 = vmatpush1.msra.mxu0 %v1426
        %1428 = vmatprep.subr.mxu0 0.0
        %v1429 = vand.u32 %v1075, 4294901760
        %v1430 = vsub.f32 %v1075, %v1429
        %v1431 = vand.u32 %v1430, 4294901760
        %1432 = vmatpush1.msra.mxu0 %v1431
        %1433 = vmatprep.subr.mxu0 0.0
        %1434 = vmatpush1.msra.mxu0 0.0
        %1435 = vmatprep.subr.mxu0 0.0
        %1436 = vmatpush1.msra.mxu0 0.0
        %1437 = vmatprep.subr.mxu0 0.0
        %1438 = vmatpush1.msra.mxu0 0.0
        %1439 = vmatprep.subr.mxu0 0.0
        %1440 = vmatpush1.msra.mxu0 0.0
        %1441 = vmatprep.subr.mxu0 0.0
        %1442 = vmatpush1.msra.mxu0 0.0
        %1443 = vmatprep.subr.mxu0 0.0
        %1444 = vmatpush1.msra.mxu0 0.0
        %1445 = vmatprep.subr.mxu0 0.0
        %1446 = vmatpush1.msra.mxu0 0.0
        %1447 = vmatprep.subr.mxu0 0.0
        %1448 = vmatpush1.msra.mxu0 0.0
        %1449 = vmatprep.subr.mxu0 0.0
        %1450 = vmatpush1.msra.mxu0 0.0
        %1451 = vmatprep.subr.mxu0 0.0
        %1452 = vmatpush1.msra.mxu0 0.0
        %1453 = vmatprep.subr.mxu0 0.0
        %1454 = vmatpush1.msra.mxu0 0.0
        %1455 = vmatprep.subr.mxu0 0.0
        %1456 = vmatpush1.msra.mxu0 0.0
        %1457 = vmatprep.subr.mxu0 0.0
        %1458 = vmatpush1.msra.mxu0 0.0
        %1459 = vmatprep.subr.mxu0 0.0
        %1460 = vmatpush1.msra.mxu0 0.0
        %1461 = vmatprep.subr.mxu0 0.0
        %1462 = vmatpush1.msra.mxu0 0.0
        %1463 = vmatprep.subr.mxu0 0.0
        %1464 = vmatpush1.msra.mxu0 0.0
        %1465 = vmatprep.subr.mxu0 0.0
        %1466 = vmatpush1.msra.mxu0 0.0
        %1467 = vmatprep.subr.mxu0 0.0
        %1468 = vmatpush1.msra.mxu0 0.0
        %1469 = vmatprep.subr.mxu0 0.0
        %1470 = vmatpush1.msra.mxu0 0.0
        %1471 = vmatprep.subr.mxu0 0.0
        %1472 = vmatpush1.msra.mxu0 0.0
        %1473 = vmatprep.subr.mxu0 0.0
        %1474 = vmatpush1.msra.mxu0 0.0
        %1475 = vmatprep.subr.mxu0 0.0
        %1476 = vmatpush1.msra.mxu0 0.0
        %1477 = vmatprep.subr.mxu0 0.0
        %1478 = vmatpush1.msra.mxu0 0.0
        %1479 = vmatprep.subr.mxu0 0.0
        %1480 = vmatpush1.msra.mxu0 0.0
        %1481 = vmatprep.subr.mxu0 0.0
        %1482 = vmatpush1.msra.mxu0 0.0
        %1483 = vmatprep.subr.mxu0 0.0
        %1484 = vmatpush1.msra.mxu0 0.0
        %1485 = vmatprep.subr.mxu0 0.0
        %1486 = vmatpush1.msra.mxu0 0.0
        %1487 = vmatprep.subr.mxu0 0.0
        %1488 = vmatpush1.msra.mxu0 0.0
        %1489 = vmatprep.subr.mxu0 0.0
        %1490 = vmatpush1.msra.mxu0 0.0
        %1491 = vmatprep.subr.mxu0 0.0
        %1492 = vmatpush1.msra.mxu0 0.0
        %1493 = vmatprep.mubr.f32.mxu0 0.0
        %v1494 = vand.u32 %v1078, 4294901760
        %1495 = vmatmul.mubr.f32.gmra.mrb[0].mxu0 %v1494
        %v1496 = vpop.f32.mrb[0].mxu0
        %v1497 = vadd.f32 %v1412, %v1496
        %v1498 = vpop.f32.mrb[0].mxu0
        %1499 = vmatprep.mubr.f32.mxu0 0.0
        %v1500 = vand.u32 %v1081, 4294901760
        %1501 = vmatmul.mubr.f32.gmra.mrb[0].mxu0 %v1500
        %v1502 = vpop.f32.mrb[0].mxu0
        %v1503 = vadd.f32 %v1420, %v1502
        %v1504 = vpop.f32.mrb[0].mxu0
        %1505 = vdwg.mxu0
        %1506 = vmatprep.subr.mxu0 0.0
        %v1507 = vand.u32 %v1074, 4294901760
        %1508 = vmatpush1.msra.mxu0 %v1507
        %1509 = vmatprep.subr.mxu0 0.0
        %v1510 = vand.u32 %v1075, 4294901760
        %1511 = vmatpush1.msra.mxu0 %v1510
        %1512 = vmatprep.subr.mxu0 0.0
        %1513 = vmatpush1.msra.mxu0 0.0
        %1514 = vmatprep.subr.mxu0 0.0
        %1515 = vmatpush1.msra.mxu0 0.0
        %1516 = vmatprep.subr.mxu0 0.0
        %1517 = vmatpush1.msra.mxu0 0.0
        %1518 = vmatprep.subr.mxu0 0.0
        %1519 = vmatpush1.msra.mxu0 0.0
        %1520 = vmatprep.subr.mxu0 0.0
        %1521 = vmatpush1.msra.mxu0 0.0
        %1522 = vmatprep.subr.mxu0 0.0
        %1523 = vmatpush1.msra.mxu0 0.0
        %1524 = vmatprep.subr.mxu0 0.0
        %1525 = vmatpush1.msra.mxu0 0.0
        %1526 = vmatprep.subr.mxu0 0.0
        %1527 = vmatpush1.msra.mxu0 0.0
        %1528 = vmatprep.subr.mxu0 0.0
        %1529 = vmatpush1.msra.mxu0 0.0
        %1530 = vmatprep.subr.mxu0 0.0
        %1531 = vmatpush1.msra.mxu0 0.0
        %1532 = vmatprep.subr.mxu0 0.0
        %1533 = vmatpush1.msra.mxu0 0.0
        %1534 = vmatprep.subr.mxu0 0.0
        %1535 = vmatpush1.msra.mxu0 0.0
        %1536 = vmatprep.subr.mxu0 0.0
        %1537 = vmatpush1.msra.mxu0 0.0
        %1538 = vmatprep.subr.mxu0 0.0
        %1539 = vmatpush1.msra.mxu0 0.0
        %1540 = vmatprep.subr.mxu0 0.0
        %1541 = vmatpush1.msra.mxu0 0.0
        %1542 = vmatprep.subr.mxu0 0.0
        %1543 = vmatpush1.msra.mxu0 0.0
        %1544 = vmatprep.subr.mxu0 0.0
        %1545 = vmatpush1.msra.mxu0 0.0
        %1546 = vmatprep.subr.mxu0 0.0
        %1547 = vmatpush1.msra.mxu0 0.0
        %1548 = vmatprep.subr.mxu0 0.0
        %1549 = vmatpush1.msra.mxu0 0.0
        %1550 = vmatprep.subr.mxu0 0.0
        %1551 = vmatpush1.msra.mxu0 0.0
        %1552 = vmatprep.subr.mxu0 0.0
        %1553 = vmatpush1.msra.mxu0 0.0
        %1554 = vmatprep.subr.mxu0 0.0
        %1555 = vmatpush1.msra.mxu0 0.0
        %1556 = vmatprep.subr.mxu0 0.0
        %1557 = vmatpush1.msra.mxu0 0.0
        %1558 = vmatprep.subr.mxu0 0.0
        %1559 = vmatpush1.msra.mxu0 0.0
        %1560 = vmatprep.subr.mxu0 0.0
        %1561 = vmatpush1.msra.mxu0 0.0
        %1562 = vmatprep.subr.mxu0 0.0
        %1563 = vmatpush1.msra.mxu0 0.0
        %1564 = vmatprep.subr.mxu0 0.0
        %1565 = vmatpush1.msra.mxu0 0.0
        %1566 = vmatprep.subr.mxu0 0.0
        %1567 = vmatpush1.msra.mxu0 0.0
        %1568 = vmatprep.subr.mxu0 0.0
        %1569 = vmatpush1.msra.mxu0 0.0
        %1570 = vmatprep.subr.mxu0 0.0
        %1571 = vmatpush1.msra.mxu0 0.0
        %1572 = vmatprep.mubr.f32.mxu0 0.0
        %v1573 = vand.u32 %v1078, 4294901760
        %1574 = vmatmul.mubr.f32.gmra.mrb[0].mxu0 %v1573
        %v1575 = vpop.f32.mrb[0].mxu0
        %v1576 = vadd.f32 %v1497, %v1575
        %v1577 = vpop.f32.mrb[0].mxu0
        %1578 = vmatprep.mubr.f32.mxu0 0.0
        %v1579 = vand.u32 %v1081, 4294901760
        %1580 = vmatmul.mubr.f32.gmra.mrb[0].mxu0 %v1579
        %v1581 = vpop.f32.mrb[0].mxu0
        %v1582 = vadd.f32 %v1503, %v1581
        %v1583 = vpop.f32.mrb[0].mxu0
        %1584 = vdwg.mxu0
        %v1585 = vadd.f32 %v1061, %v1576
        %v1586 = vadd.f32 %v1068, %v1582
        %vm1587 = vcmp.gt.f32.partialorder %v1585, 0.0
        %vm1588 = vcmp.gt.f32.partialorder %v1586, 0.0
        %v1589 = vmin.f32 %v1585, 0.0
        %v1590 = vmin.f32 %v1586, 0.0
        %v1591 = vmul.f32 %v1589, 1.442695
        %v1592 = vpow.pop %v1591
        %v1593 = vmul.f32 %v1590, 1.442695
        %v1594 = vpow.pop %v1593
        %v1595 = vsub.f32 %v1592, 1.0
        %v1596 = vsub.f32 %v1594, 1.0
        %v1597 = vsel %vm1587, %v1585, %v1595
        %v1598 = vsel %vm1588, %v1586, %v1596
        %v1599 = vld [vmem:[%s5] sm:$0xff]
        %v1600 = vld [vmem:[%s5 + $0x8] sm:$0xff]
        %v1601 = vld [vmem:[%s5 + $0x10] sm:$0xff]
        %v1602 = vld [vmem:[%s5 + $0x18] sm:$0xff]
        %v1603 = vld [vmem:[%s5 + $0x20] sm:$0xff]
        %v1604 = vld [vmem:[%s5 + $0x28] sm:$0xff]
        %v1605 = vld [vmem:[%s6] sm:$0x1]
        %v1607 = vlaneseq
        %v1608 = vshrl.u32 %v1607, 7
        %v1609 = vsub.s32 0, %v1608
        %v1610 = vrot.slane %v1605, %v1609
        %vm1612 = vcmask 392192
        %v1614 = vsel %vm1612, %v1597, 0
        %v1617 = vsel %vm1612, %v1598, 0
        %1619 = vmatprep.subr.mxu0 0.0
        %v1620 = vand.u32 %v1599, 4294901760
        %1621 = vmatpush1.msra.mxu0 %v1620
        %1622 = vmatprep.subr.mxu0 0.0
        %v1623 = vand.u32 %v1600, 4294901760
        %1624 = vmatpush1.msra.mxu0 %v1623
        %1625 = vmatprep.subr.mxu0 0.0
        %v1626 = vand.u32 %v1601, 4294901760
        %1627 = vmatpush1.msra.mxu0 %v1626
        %1628 = vmatprep.subr.mxu0 0.0
        %v1629 = vand.u32 %v1602, 4294901760
        %1630 = vmatpush1.msra.mxu0 %v1629
        %1631 = vmatprep.subr.mxu0 0.0
        %v1632 = vand.u32 %v1603, 4294901760
        %1633 = vmatpush1.msra.mxu0 %v1632
        %1634 = vmatprep.subr.mxu0 0.0
        %v1635 = vand.u32 %v1604, 4294901760
        %1636 = vmatpush1.msra.mxu0 %v1635
        %1637 = vmatprep.subr.mxu0 0.0
        %1638 = vmatpush1.msra.mxu0 0.0
        %1639 = vmatprep.subr.mxu0 0.0
        %1640 = vmatpush1.msra.mxu0 0.0
        %1641 = vmatprep.subr.mxu0 0.0
        %1642 = vmatpush1.msra.mxu0 0.0
        %1643 = vmatprep.subr.mxu0 0.0
        %1644 = vmatpush1.msra.mxu0 0.0
        %1645 = vmatprep.subr.mxu0 0.0
        %1646 = vmatpush1.msra.mxu0 0.0
        %1647 = vmatprep.subr.mxu0 0.0
        %1648 = vmatpush1.msra.mxu0 0.0
        %1649 = vmatprep.subr.mxu0 0.0
        %1650 = vmatpush1.msra.mxu0 0.0
        %1651 = vmatprep.subr.mxu0 0.0
        %1652 = vmatpush1.msra.mxu0 0.0
        %1653 = vmatprep.subr.mxu0 0.0
        %1654 = vmatpush1.msra.mxu0 0.0
        %1655 = vmatprep.subr.mxu0 0.0
        %1656 = vmatpush1.msra.mxu0 0.0
        %1657 = vmatprep.subr.mxu0 0.0
        %1658 = vmatpush1.msra.mxu0 0.0
        %1659 = vmatprep.subr.mxu0 0.0
        %1660 = vmatpush1.msra.mxu0 0.0
        %1661 = vmatprep.subr.mxu0 0.0
        %1662 = vmatpush1.msra.mxu0 0.0
        %1663 = vmatprep.subr.mxu0 0.0
        %1664 = vmatpush1.msra.mxu0 0.0
        %1665 = vmatprep.subr.mxu0 0.0
        %1666 = vmatpush1.msra.mxu0 0.0
        %1667 = vmatprep.subr.mxu0 0.0
        %1668 = vmatpush1.msra.mxu0 0.0
        %1669 = vmatprep.subr.mxu0 0.0
        %1670 = vmatpush1.msra.mxu0 0.0
        %1671 = vmatprep.subr.mxu0 0.0
        %1672 = vmatpush1.msra.mxu0 0.0
        %1673 = vmatprep.subr.mxu0 0.0
        %1674 = vmatpush1.msra.mxu0 0.0
        %1675 = vmatprep.subr.mxu0 0.0
        %1676 = vmatpush1.msra.mxu0 0.0
        %1677 = vmatprep.subr.mxu0 0.0
        %1678 = vmatpush1.msra.mxu0 0.0
        %1679 = vmatprep.subr.mxu0 0.0
        %1680 = vmatpush1.msra.mxu0 0.0
        %1681 = vmatprep.subr.mxu0 0.0
        %1682 = vmatpush1.msra.mxu0 0.0
        %1683 = vmatprep.subr.mxu0 0.0
        %1684 = vmatpush1.msra.mxu0 0.0
        %1685 = vmatprep.subr.mxu0 0.0
        %1686 = vmatpush1.msra.mxu0 0.0
        %1687 = vmatprep.subr.mxu0 0.0
        %1688 = vmatpush1.msra.mxu0 0.0
        %1689 = vmatprep.mubr.f32.mxu0 0.0
        %v1690 = vand.u32 %v1614, 4294901760
        %v1691 = vsub.f32 %v1614, %v1690
        %v1692 = vand.u32 %v1691, 4294901760
        %v1693 = vsub.f32 %v1691, %v1692
        %v1694 = vand.u32 %v1693, 4294901760
        %1695 = vmatmul.mubr.f32.gmra.mrb[0].mxu0 %v1694
        %v1696 = vpop.f32.mrb[0].mxu0
        %v1697 = vadd.f32 %v1610, %v1696
        %v1698 = vpop.f32.mrb[0].mxu0
        %1699 = vmatprep.mubr.f32.mxu0 0.0
        %v1700 = vand.u32 %v1617, 4294901760
        %v1701 = vsub.f32 %v1617, %v1700
        %v1702 = vand.u32 %v1701, 4294901760
        %v1703 = vsub.f32 %v1701, %v1702
        %v1704 = vand.u32 %v1703, 4294901760
        %1705 = vmatmul.mubr.f32.gmra.mrb[0].mxu0 %v1704
        %v1706 = vpop.f32.mrb[0].mxu0
        %v1707 = vadd.f32 %v1610, %v1706
        %v1708 = vpop.f32.mrb[0].mxu0
        %1709 = vdwg.mxu0
        %1710 = vmatprep.subr.mxu0 0.0
        %v1711 = vand.u32 %v1599, 4294901760
        %v1712 = vsub.f32 %v1599, %v1711
        %v1713 = vand.u32 %v1712, 4294901760
        %v1714 = vsub.f32 %v1712, %v1713
        %v1715 = vand.u32 %v1714, 4294901760
        %1716 = vmatpush1.msra.mxu0 %v1715
        %1717 = vmatprep.subr.mxu0 0.0
        %v1718 = vand.u32 %v1600, 4294901760
        %v1719 = vsub.f32 %v1600, %v1718
        %v1720 = vand.u32 %v1719, 4294901760
        %v1721 = vsub.f32 %v1719, %v1720
        %v1722 = vand.u32 %v1721, 4294901760
        %1723 = vmatpush1.msra.mxu0 %v1722
        %1724 = vmatprep.subr.mxu0 0.0
        %v1725 = vand.u32 %v1601, 4294901760
        %v1726 = vsub.f32 %v1601, %v1725
        %v1727 = vand.u32 %v1726, 4294901760
        %v1728 = vsub.f32 %v1726, %v1727
        %v1729 = vand.u32 %v1728, 4294901760
        %1730 = vmatpush1.msra.mxu0 %v1729
        %1731 = vmatprep.subr.mxu0 0.0
        %v1732 = vand.u32 %v1602, 4294901760
        %v1733 = vsub.f32 %v1602, %v1732
        %v1734 = vand.u32 %v1733, 4294901760
        %v1735 = vsub.f32 %v1733, %v1734
        %v1736 = vand.u32 %v1735, 4294901760
        %1737 = vmatpush1.msra.mxu0 %v1736
        %1738 = vmatprep.subr.mxu0 0.0
        %v1739 = vand.u32 %v1603, 4294901760
        %v1740 = vsub.f32 %v1603, %v1739
        %v1741 = vand.u32 %v1740, 4294901760
        %v1742 = vsub.f32 %v1740, %v1741
        %v1743 = vand.u32 %v1742, 4294901760
        %1744 = vmatpush1.msra.mxu0 %v1743
        %1745 = vmatprep.subr.mxu0 0.0
        %v1746 = vand.u32 %v1604, 4294901760
        %v1747 = vsub.f32 %v1604, %v1746
        %v1748 = vand.u32 %v1747, 4294901760
        %v1749 = vsub.f32 %v1747, %v1748
        %v1750 = vand.u32 %v1749, 4294901760
        %1751 = vmatpush1.msra.mxu0 %v1750
        %1752 = vmatprep.subr.mxu0 0.0
        %1753 = vmatpush1.msra.mxu0 0.0
        %1754 = vmatprep.subr.mxu0 0.0
        %1755 = vmatpush1.msra.mxu0 0.0
        %1756 = vmatprep.subr.mxu0 0.0
        %1757 = vmatpush1.msra.mxu0 0.0
        %1758 = vmatprep.subr.mxu0 0.0
        %1759 = vmatpush1.msra.mxu0 0.0
        %1760 = vmatprep.subr.mxu0 0.0
        %1761 = vmatpush1.msra.mxu0 0.0
        %1762 = vmatprep.subr.mxu0 0.0
        %1763 = vmatpush1.msra.mxu0 0.0
        %1764 = vmatprep.subr.mxu0 0.0
        %1765 = vmatpush1.msra.mxu0 0.0
        %1766 = vmatprep.subr.mxu0 0.0
        %1767 = vmatpush1.msra.mxu0 0.0
        %1768 = vmatprep.subr.mxu0 0.0
        %1769 = vmatpush1.msra.mxu0 0.0
        %1770 = vmatprep.subr.mxu0 0.0
        %1771 = vmatpush1.msra.mxu0 0.0
        %1772 = vmatprep.subr.mxu0 0.0
        %1773 = vmatpush1.msra.mxu0 0.0
        %1774 = vmatprep.subr.mxu0 0.0
        %1775 = vmatpush1.msra.mxu0 0.0
        %1776 = vmatprep.subr.mxu0 0.0
        %1777 = vmatpush1.msra.mxu0 0.0
        %1778 = vmatprep.subr.mxu0 0.0
        %1779 = vmatpush1.msra.mxu0 0.0
        %1780 = vmatprep.subr.mxu0 0.0
        %1781 = vmatpush1.msra.mxu0 0.0
        %1782 = vmatprep.subr.mxu0 0.0
        %1783 = vmatpush1.msra.mxu0 0.0
        %1784 = vmatprep.subr.mxu0 0.0
        %1785 = vmatpush1.msra.mxu0 0.0
        %1786 = vmatprep.subr.mxu0 0.0
        %1787 = vmatpush1.msra.mxu0 0.0
        %1788 = vmatprep.subr.mxu0 0.0
        %1789 = vmatpush1.msra.mxu0 0.0
        %1790 = vmatprep.subr.mxu0 0.0
        %1791 = vmatpush1.msra.mxu0 0.0
        %1792 = vmatprep.subr.mxu0 0.0
        %1793 = vmatpush1.msra.mxu0 0.0
        %1794 = vmatprep.subr.mxu0 0.0
        %1795 = vmatpush1.msra.mxu0 0.0
        %1796 = vmatprep.subr.mxu0 0.0
        %1797 = vmatpush1.msra.mxu0 0.0
        %1798 = vmatprep.subr.mxu0 0.0
        %1799 = vmatpush1.msra.mxu0 0.0
        %1800 = vmatprep.subr.mxu0 0.0
        %1801 = vmatpush1.msra.mxu0 0.0
        %1802 = vmatprep.subr.mxu0 0.0
        %1803 = vmatpush1.msra.mxu0 0.0
        %1804 = vmatprep.mubr.f32.mxu0 0.0
        %v1805 = vand.u32 %v1614, 4294901760
        %1806 = vmatmul.mubr.f32.gmra.mrb[0].mxu0 %v1805
        %v1807 = vpop.f32.mrb[0].mxu0
        %v1808 = vadd.f32 %v1697, %v1807
        %v1809 = vpop.f32.mrb[0].mxu0
        %1810 = vmatprep.mubr.f32.mxu0 0.0
        %v1811 = vand.u32 %v1617, 4294901760
        %1812 = vmatmul.mubr.f32.gmra.mrb[0].mxu0 %v1811
        %v1813 = vpop.f32.mrb[0].mxu0
        %v1814 = vadd.f32 %v1707, %v1813
        %v1815 = vpop.f32.mrb[0].mxu0
        %1816 = vdwg.mxu0
        %1817 = vmatprep.subr.mxu0 0.0
        %v1818 = vand.u32 %v1599, 4294901760
        %v1819 = vsub.f32 %v1599, %v1818
        %1820 = vmatpush1.msra.mxu0 %v1819
        %1821 = vmatprep.subr.mxu0 0.0
        %v1822 = vand.u32 %v1600, 4294901760
        %v1823 = vsub.f32 %v1600, %v1822
        %1824 = vmatpush1.msra.mxu0 %v1823
        %1825 = vmatprep.subr.mxu0 0.0
        %v1826 = vand.u32 %v1601, 4294901760
        %v1827 = vsub.f32 %v1601, %v1826
        %1828 = vmatpush1.msra.mxu0 %v1827
        %1829 = vmatprep.subr.mxu0 0.0
        %v1830 = vand.u32 %v1602, 4294901760
        %v1831 = vsub.f32 %v1602, %v1830
        %1832 = vmatpush1.msra.mxu0 %v1831
        %1833 = vmatprep.subr.mxu0 0.0
        %v1834 = vand.u32 %v1603, 4294901760
        %v1835 = vsub.f32 %v1603, %v1834
        %1836 = vmatpush1.msra.mxu0 %v1835
        %1837 = vmatprep.subr.mxu0 0.0
        %v1838 = vand.u32 %v1604, 4294901760
        %v1839 = vsub.f32 %v1604, %v1838
        %1840 = vmatpush1.msra.mxu0 %v1839
        %1841 = vmatprep.subr.mxu0 0.0
        %1842 = vmatpush1.msra.mxu0 0.0
        %1843 = vmatprep.subr.mxu0 0.0
        %1844 = vmatpush1.msra.mxu0 0.0
        %1845 = vmatprep.subr.mxu0 0.0
        %1846 = vmatpush1.msra.mxu0 0.0
        %1847 = vmatprep.subr.mxu0 0.0
        %1848 = vmatpush1.msra.mxu0 0.0
        %1849 = vmatprep.subr.mxu0 0.0
        %1850 = vmatpush1.msra.mxu0 0.0
        %1851 = vmatprep.subr.mxu0 0.0
        %1852 = vmatpush1.msra.mxu0 0.0
        %1853 = vmatprep.subr.mxu0 0.0
        %1854 = vmatpush1.msra.mxu0 0.0
        %1855 = vmatprep.subr.mxu0 0.0
        %1856 = vmatpush1.msra.mxu0 0.0
        %1857 = vmatprep.subr.mxu0 0.0
        %1858 = vmatpush1.msra.mxu0 0.0
        %1859 = vmatprep.subr.mxu0 0.0
        %1860 = vmatpush1.msra.mxu0 0.0
        %1861 = vmatprep.subr.mxu0 0.0
        %1862 = vmatpush1.msra.mxu0 0.0
        %1863 = vmatprep.subr.mxu0 0.0
        %1864 = vmatpush1.msra.mxu0 0.0
        %1865 = vmatprep.subr.mxu0 0.0
        %1866 = vmatpush1.msra.mxu0 0.0
        %1867 = vmatprep.subr.mxu0 0.0
        %1868 = vmatpush1.msra.mxu0 0.0
        %1869 = vmatprep.subr.mxu0 0.0
        %1870 = vmatpush1.msra.mxu0 0.0
        %1871 = vmatprep.subr.mxu0 0.0
        %1872 = vmatpush1.msra.mxu0 0.0
        %1873 = vmatprep.subr.mxu0 0.0
        %1874 = vmatpush1.msra.mxu0 0.0
        %1875 = vmatprep.subr.mxu0 0.0
        %1876 = vmatpush1.msra.mxu0 0.0
        %1877 = vmatprep.subr.mxu0 0.0
        %1878 = vmatpush1.msra.mxu0 0.0
        %1879 = vmatprep.subr.mxu0 0.0
        %1880 = vmatpush1.msra.mxu0 0.0
        %1881 = vmatprep.subr.mxu0 0.0
        %1882 = vmatpush1.msra.mxu0 0.0
        %1883 = vmatprep.subr.mxu0 0.0
        %1884 = vmatpush1.msra.mxu0 0.0
        %1885 = vmatprep.subr.mxu0 0.0
        %1886 = vmatpush1.msra.mxu0 0.0
        %1887 = vmatprep.subr.mxu0 0.0
        %1888 = vmatpush1.msra.mxu0 0.0
        %1889 = vmatprep.subr.mxu0 0.0
        %1890 = vmatpush1.msra.mxu0 0.0
        %1891 = vmatprep.subr.mxu0 0.0
        %1892 = vmatpush1.msra.mxu0 0.0
        %1893 = vmatprep.mubr.f32.mxu0 0.0
        %v1894 = vand.u32 %v1614, 4294901760
        %v1895 = vsub.f32 %v1614, %v1894
        %1896 = vmatmul.mubr.f32.gmra.mrb[0].mxu0 %v1895
        %v1897 = vpop.f32.mrb[0].mxu0
        %v1898 = vadd.f32 %v1808, %v1897
        %v1899 = vpop.f32.mrb[0].mxu0
        %1900 = vmatprep.mubr.f32.mxu0 0.0
        %v1901 = vand.u32 %v1617, 4294901760
        %v1902 = vsub.f32 %v1617, %v1901
        %1903 = vmatmul.mubr.f32.gmra.mrb[0].mxu0 %v1902
        %v1904 = vpop.f32.mrb[0].mxu0
        %v1905 = vadd.f32 %v1814, %v1904
        %v1906 = vpop.f32.mrb[0].mxu0
        %1907 = vdwg.mxu0
        %1908 = vmatprep.subr.mxu0 0.0
        %v1909 = vand.u32 %v1599, 4294901760
        %1910 = vmatpush1.msra.mxu0 %v1909
        %1911 = vmatprep.subr.mxu0 0.0
        %v1912 = vand.u32 %v1600, 4294901760
        %1913 = vmatpush1.msra.mxu0 %v1912
        %1914 = vmatprep.subr.mxu0 0.0
        %v1915 = vand.u32 %v1601, 4294901760
        %1916 = vmatpush1.msra.mxu0 %v1915
        %1917 = vmatprep.subr.mxu0 0.0
        %v1918 = vand.u32 %v1602, 4294901760
        %1919 = vmatpush1.msra.mxu0 %v1918
        %1920 = vmatprep.subr.mxu0 0.0
        %v1921 = vand.u32 %v1603, 4294901760
        %1922 = vmatpush1.msra.mxu0 %v1921
        %1923 = vmatprep.subr.mxu0 0.0
        %v1924 = vand.u32 %v1604, 4294901760
        %1925 = vmatpush1.msra.mxu0 %v1924
        %1926 = vmatprep.subr.mxu0 0.0
        %1927 = vmatpush1.msra.mxu0 0.0
        %1928 = vmatprep.subr.mxu0 0.0
        %1929 = vmatpush1.msra.mxu0 0.0
        %1930 = vmatprep.subr.mxu0 0.0
        %1931 = vmatpush1.msra.mxu0 0.0
        %1932 = vmatprep.subr.mxu0 0.0
        %1933 = vmatpush1.msra.mxu0 0.0
        %1934 = vmatprep.subr.mxu0 0.0
        %1935 = vmatpush1.msra.mxu0 0.0
        %1936 = vmatprep.subr.mxu0 0.0
        %1937 = vmatpush1.msra.mxu0 0.0
        %1938 = vmatprep.subr.mxu0 0.0
        %1939 = vmatpush1.msra.mxu0 0.0
        %1940 = vmatprep.subr.mxu0 0.0
        %1941 = vmatpush1.msra.mxu0 0.0
        %1942 = vmatprep.subr.mxu0 0.0
        %1943 = vmatpush1.msra.mxu0 0.0
        %1944 = vmatprep.subr.mxu0 0.0
        %1945 = vmatpush1.msra.mxu0 0.0
        %1946 = vmatprep.subr.mxu0 0.0
        %1947 = vmatpush1.msra.mxu0 0.0
        %1948 = vmatprep.subr.mxu0 0.0
        %1949 = vmatpush1.msra.mxu0 0.0
        %1950 = vmatprep.subr.mxu0 0.0
        %1951 = vmatpush1.msra.mxu0 0.0
        %1952 = vmatprep.subr.mxu0 0.0
        %1953 = vmatpush1.msra.mxu0 0.0
        %1954 = vmatprep.subr.mxu0 0.0
        %1955 = vmatpush1.msra.mxu0 0.0
        %1956 = vmatprep.subr.mxu0 0.0
        %1957 = vmatpush1.msra.mxu0 0.0
        %1958 = vmatprep.subr.mxu0 0.0
        %1959 = vmatpush1.msra.mxu0 0.0
        %1960 = vmatprep.subr.mxu0 0.0
        %1961 = vmatpush1.msra.mxu0 0.0
        %1962 = vmatprep.subr.mxu0 0.0
        %1963 = vmatpush1.msra.mxu0 0.0
        %1964 = vmatprep.subr.mxu0 0.0
        %1965 = vmatpush1.msra.mxu0 0.0
        %1966 = vmatprep.subr.mxu0 0.0
        %1967 = vmatpush1.msra.mxu0 0.0
        %1968 = vmatprep.subr.mxu0 0.0
        %1969 = vmatpush1.msra.mxu0 0.0
        %1970 = vmatprep.subr.mxu0 0.0
        %1971 = vmatpush1.msra.mxu0 0.0
        %1972 = vmatprep.subr.mxu0 0.0
        %1973 = vmatpush1.msra.mxu0 0.0
        %1974 = vmatprep.subr.mxu0 0.0
        %1975 = vmatpush1.msra.mxu0 0.0
        %1976 = vmatprep.subr.mxu0 0.0
        %1977 = vmatpush1.msra.mxu0 0.0
        %1978 = vmatprep.mubr.f32.mxu0 0.0
        %v1979 = vand.u32 %v1614, 4294901760
        %v1980 = vsub.f32 %v1614, %v1979
        %v1981 = vand.u32 %v1980, 4294901760
        %1982 = vmatmul.mubr.f32.gmra.mrb[0].mxu0 %v1981
        %v1983 = vpop.f32.mrb[0].mxu0
        %v1984 = vadd.f32 %v1898, %v1983
        %v1985 = vpop.f32.mrb[0].mxu0
        %1986 = vmatprep.mubr.f32.mxu0 0.0
        %v1987 = vand.u32 %v1617, 4294901760
        %v1988 = vsub.f32 %v1617, %v1987
        %v1989 = vand.u32 %v1988, 4294901760
        %1990 = vmatmul.mubr.f32.gmra.mrb[0].mxu0 %v1989
        %v1991 = vpop.f32.mrb[0].mxu0
        %v1992 = vadd.f32 %v1905, %v1991
        %v1993 = vpop.f32.mrb[0].mxu0
        %1994 = vdwg.mxu0
        %1995 = vmatprep.subr.mxu0 0.0
        %v1996 = vand.u32 %v1599, 4294901760
        %v1997 = vsub.f32 %v1599, %v1996
        %v1998 = vand.u32 %v1997, 4294901760
        %1999 = vmatpush1.msra.mxu0 %v1998
        %2000 = vmatprep.subr.mxu0 0.0
        %v2001 = vand.u32 %v1600, 4294901760
        %v2002 = vsub.f32 %v1600, %v2001
        %v2003 = vand.u32 %v2002, 4294901760
        %2004 = vmatpush1.msra.mxu0 %v2003
        %2005 = vmatprep.subr.mxu0 0.0
        %v2006 = vand.u32 %v1601, 4294901760
        %v2007 = vsub.f32 %v1601, %v2006
        %v2008 = vand.u32 %v2007, 4294901760
        %2009 = vmatpush1.msra.mxu0 %v2008
        %2010 = vmatprep.subr.mxu0 0.0
        %v2011 = vand.u32 %v1602, 4294901760
        %v2012 = vsub.f32 %v1602, %v2011
        %v2013 = vand.u32 %v2012, 4294901760
        %2014 = vmatpush1.msra.mxu0 %v2013
        %2015 = vmatprep.subr.mxu0 0.0
        %v2016 = vand.u32 %v1603, 4294901760
        %v2017 = vsub.f32 %v1603, %v2016
        %v2018 = vand.u32 %v2017, 4294901760
        %2019 = vmatpush1.msra.mxu0 %v2018
        %2020 = vmatprep.subr.mxu0 0.0
        %v2021 = vand.u32 %v1604, 4294901760
        %v2022 = vsub.f32 %v1604, %v2021
        %v2023 = vand.u32 %v2022, 4294901760
        %2024 = vmatpush1.msra.mxu0 %v2023
        %2025 = vmatprep.subr.mxu0 0.0
        %2026 = vmatpush1.msra.mxu0 0.0
        %2027 = vmatprep.subr.mxu0 0.0
        %2028 = vmatpush1.msra.mxu0 0.0
        %2029 = vmatprep.subr.mxu0 0.0
        %2030 = vmatpush1.msra.mxu0 0.0
        %2031 = vmatprep.subr.mxu0 0.0
        %2032 = vmatpush1.msra.mxu0 0.0
        %2033 = vmatprep.subr.mxu0 0.0
        %2034 = vmatpush1.msra.mxu0 0.0
        %2035 = vmatprep.subr.mxu0 0.0
        %2036 = vmatpush1.msra.mxu0 0.0
        %2037 = vmatprep.subr.mxu0 0.0
        %2038 = vmatpush1.msra.mxu0 0.0
        %2039 = vmatprep.subr.mxu0 0.0
        %2040 = vmatpush1.msra.mxu0 0.0
        %2041 = vmatprep.subr.mxu0 0.0
        %2042 = vmatpush1.msra.mxu0 0.0
        %2043 = vmatprep.subr.mxu0 0.0
        %2044 = vmatpush1.msra.mxu0 0.0
        %2045 = vmatprep.subr.mxu0 0.0
        %2046 = vmatpush1.msra.mxu0 0.0
        %2047 = vmatprep.subr.mxu0 0.0
        %2048 = vmatpush1.msra.mxu0 0.0
        %2049 = vmatprep.subr.mxu0 0.0
        %2050 = vmatpush1.msra.mxu0 0.0
        %2051 = vmatprep.subr.mxu0 0.0
        %2052 = vmatpush1.msra.mxu0 0.0
        %2053 = vmatprep.subr.mxu0 0.0
        %2054 = vmatpush1.msra.mxu0 0.0
        %2055 = vmatprep.subr.mxu0 0.0
        %2056 = vmatpush1.msra.mxu0 0.0
        %2057 = vmatprep.subr.mxu0 0.0
        %2058 = vmatpush1.msra.mxu0 0.0
        %2059 = vmatprep.subr.mxu0 0.0
        %2060 = vmatpush1.msra.mxu0 0.0
        %2061 = vmatprep.subr.mxu0 0.0
        %2062 = vmatpush1.msra.mxu0 0.0
        %2063 = vmatprep.subr.mxu0 0.0
        %2064 = vmatpush1.msra.mxu0 0.0
        %2065 = vmatprep.subr.mxu0 0.0
        %2066 = vmatpush1.msra.mxu0 0.0
        %2067 = vmatprep.subr.mxu0 0.0
        %2068 = vmatpush1.msra.mxu0 0.0
        %2069 = vmatprep.subr.mxu0 0.0
        %2070 = vmatpush1.msra.mxu0 0.0
        %2071 = vmatprep.subr.mxu0 0.0
        %2072 = vmatpush1.msra.mxu0 0.0
        %2073 = vmatprep.subr.mxu0 0.0
        %2074 = vmatpush1.msra.mxu0 0.0
        %2075 = vmatprep.subr.mxu0 0.0
        %2076 = vmatpush1.msra.mxu0 0.0
        %2077 = vmatprep.mubr.f32.mxu0 0.0
        %v2078 = vand.u32 %v1614, 4294901760
        %2079 = vmatmul.mubr.f32.gmra.mrb[0].mxu0 %v2078
        %v2080 = vpop.f32.mrb[0].mxu0
        %v2081 = vadd.f32 %v1984, %v2080
        %v2082 = vpop.f32.mrb[0].mxu0
        %2083 = vmatprep.mubr.f32.mxu0 0.0
        %v2084 = vand.u32 %v1617, 4294901760
        %2085 = vmatmul.mubr.f32.gmra.mrb[0].mxu0 %v2084
        %v2086 = vpop.f32.mrb[0].mxu0
        %v2087 = vadd.f32 %v1992, %v2086
        %v2088 = vpop.f32.mrb[0].mxu0
        %2089 = vdwg.mxu0
        %2090 = vmatprep.subr.mxu0 0.0
        %v2091 = vand.u32 %v1599, 4294901760
        %2092 = vmatpush1.msra.mxu0 %v2091
        %2093 = vmatprep.subr.mxu0 0.0
        %v2094 = vand.u32 %v1600, 4294901760
        %2095 = vmatpush1.msra.mxu0 %v2094
        %2096 = vmatprep.subr.mxu0 0.0
        %v2097 = vand.u32 %v1601, 4294901760
        %2098 = vmatpush1.msra.mxu0 %v2097
        %2099 = vmatprep.subr.mxu0 0.0
        %v2100 = vand.u32 %v1602, 4294901760
        %2101 = vmatpush1.msra.mxu0 %v2100
        %2102 = vmatprep.subr.mxu0 0.0
        %v2103 = vand.u32 %v1603, 4294901760
        %2104 = vmatpush1.msra.mxu0 %v2103
        %2105 = vmatprep.subr.mxu0 0.0
        %v2106 = vand.u32 %v1604, 4294901760
        %2107 = vmatpush1.msra.mxu0 %v2106
        %2108 = vmatprep.subr.mxu0 0.0
        %2109 = vmatpush1.msra.mxu0 0.0
        %2110 = vmatprep.subr.mxu0 0.0
        %2111 = vmatpush1.msra.mxu0 0.0
        %2112 = vmatprep.subr.mxu0 0.0
        %2113 = vmatpush1.msra.mxu0 0.0
        %2114 = vmatprep.subr.mxu0 0.0
        %2115 = vmatpush1.msra.mxu0 0.0
        %2116 = vmatprep.subr.mxu0 0.0
        %2117 = vmatpush1.msra.mxu0 0.0
        %2118 = vmatprep.subr.mxu0 0.0
        %2119 = vmatpush1.msra.mxu0 0.0
        %2120 = vmatprep.subr.mxu0 0.0
        %2121 = vmatpush1.msra.mxu0 0.0
        %2122 = vmatprep.subr.mxu0 0.0
        %2123 = vmatpush1.msra.mxu0 0.0
        %2124 = vmatprep.subr.mxu0 0.0
        %2125 = vmatpush1.msra.mxu0 0.0
        %2126 = vmatprep.subr.mxu0 0.0
        %2127 = vmatpush1.msra.mxu0 0.0
        %2128 = vmatprep.subr.mxu0 0.0
        %2129 = vmatpush1.msra.mxu0 0.0
        %2130 = vmatprep.subr.mxu0 0.0
        %2131 = vmatpush1.msra.mxu0 0.0
        %2132 = vmatprep.subr.mxu0 0.0
        %2133 = vmatpush1.msra.mxu0 0.0
        %2134 = vmatprep.subr.mxu0 0.0
        %2135 = vmatpush1.msra.mxu0 0.0
        %2136 = vmatprep.subr.mxu0 0.0
        %2137 = vmatpush1.msra.mxu0 0.0
        %2138 = vmatprep.subr.mxu0 0.0
        %2139 = vmatpush1.msra.mxu0 0.0
        %2140 = vmatprep.subr.mxu0 0.0
        %2141 = vmatpush1.msra.mxu0 0.0
        %2142 = vmatprep.subr.mxu0 0.0
        %2143 = vmatpush1.msra.mxu0 0.0
        %2144 = vmatprep.subr.mxu0 0.0
        %2145 = vmatpush1.msra.mxu0 0.0
        %2146 = vmatprep.subr.mxu0 0.0
        %2147 = vmatpush1.msra.mxu0 0.0
        %2148 = vmatprep.subr.mxu0 0.0
        %2149 = vmatpush1.msra.mxu0 0.0
        %2150 = vmatprep.subr.mxu0 0.0
        %2151 = vmatpush1.msra.mxu0 0.0
        %2152 = vmatprep.subr.mxu0 0.0
        %2153 = vmatpush1.msra.mxu0 0.0
        %2154 = vmatprep.subr.mxu0 0.0
        %2155 = vmatpush1.msra.mxu0 0.0
        %2156 = vmatprep.subr.mxu0 0.0
        %2157 = vmatpush1.msra.mxu0 0.0
        %2158 = vmatprep.subr.mxu0 0.0
        %2159 = vmatpush1.msra.mxu0 0.0
        %2160 = vmatprep.mubr.f32.mxu0 0.0
        %v2161 = vand.u32 %v1614, 4294901760
        %2162 = vmatmul.mubr.f32.gmra.mrb[0].mxu0 %v2161
        %v2163 = vpop.f32.mrb[0].mxu0
        %v2164 = vadd.f32 %v2081, %v2163
        %v2165 = vpop.f32.mrb[0].mxu0
        %2166 = vmatprep.mubr.f32.mxu0 0.0
        %v2167 = vand.u32 %v1617, 4294901760
        %2168 = vmatmul.mubr.f32.gmra.mrb[0].mxu0 %v2167
        %v2169 = vpop.f32.mrb[0].mxu0
        %v2170 = vadd.f32 %v2087, %v2169
        %v2171 = vpop.f32.mrb[0].mxu0
        %2172 = vdwg.mxu0
        %v2173 = vld [vmem:[%s7] sm:$0xff]
        %v2174 = vld [vmem:[%s7 + $0x8] sm:$0xff]
        %v2175 = vld [vmem:[%s7 + $0x10] sm:$0xff]
        %v2176 = vld [vmem:[%s7 + $0x18] sm:$0xff]
        %v2177 = vld [vmem:[%s7 + $0x20] sm:$0xff]
        %v2178 = vld [vmem:[%s7 + $0x28] sm:$0xff]
        %v2179 = vld [vmem:[%s8] sm:$0x3]
        %v2181 = vlaneseq
        %v2182 = vshrl.u32 %v2181, 7
        %v2183 = vsub.s32 0, %v2182
        %v2184 = vrot.slane %v2179, %v2183
        %v2185 = vlaneseq
        %v2186 = vshrl.u32 %v2185, 7
        %v2187 = vsub.s32 1, %v2186
        %v2188 = vrot.slane %v2179, %v2187
        %vm2191 = vcmask 195584
        %v2193 = vsel %vm2191, %v2164, 0
        %v2196 = vsel %vm2191, %v2170, 0
        %v2198 = vand.u32 %v2174, 4294901760
        %2199 = vmatprep.subr.mxu0 %v2198
        %v2200 = vand.u32 %v2173, 4294901760
        %2201 = vmatpush1.msra.mxu0 %v2200
        %v2202 = vand.u32 %v2176, 4294901760
        %2203 = vmatprep.subr.mxu0 %v2202
        %v2204 = vand.u32 %v2175, 4294901760
        %2205 = vmatpush1.msra.mxu0 %v2204
        %v2206 = vand.u32 %v2178, 4294901760
        %2207 = vmatprep.subr.mxu0 %v2206
        %v2208 = vand.u32 %v2177, 4294901760
        %2209 = vmatpush1.msra.mxu0 %v2208
        %2210 = vmatprep.subr.mxu0 0.0
        %2211 = vmatpush1.msra.mxu0 0.0
        %2212 = vmatprep.subr.mxu0 0.0
        %2213 = vmatpush1.msra.mxu0 0.0
        %2214 = vmatprep.subr.mxu0 0.0
        %2215 = vmatpush1.msra.mxu0 0.0
        %2216 = vmatprep.subr.mxu0 0.0
        %2217 = vmatpush1.msra.mxu0 0.0
        %2218 = vmatprep.subr.mxu0 0.0
        %2219 = vmatpush1.msra.mxu0 0.0
        %2220 = vmatprep.subr.mxu0 0.0
        %2221 = vmatpush1.msra.mxu0 0.0
        %2222 = vmatprep.subr.mxu0 0.0
        %2223 = vmatpush1.msra.mxu0 0.0
        %2224 = vmatprep.subr.mxu0 0.0
        %2225 = vmatpush1.msra.mxu0 0.0
        %2226 = vmatprep.subr.mxu0 0.0
        %2227 = vmatpush1.msra.mxu0 0.0
        %2228 = vmatprep.subr.mxu0 0.0
        %2229 = vmatpush1.msra.mxu0 0.0
        %2230 = vmatprep.subr.mxu0 0.0
        %2231 = vmatpush1.msra.mxu0 0.0
        %2232 = vmatprep.subr.mxu0 0.0
        %2233 = vmatpush1.msra.mxu0 0.0
        %2234 = vmatprep.subr.mxu0 0.0
        %2235 = vmatpush1.msra.mxu0 0.0
        %2236 = vmatprep.subr.mxu0 0.0
        %2237 = vmatpush1.msra.mxu0 0.0
        %2238 = vmatprep.subr.mxu0 0.0
        %2239 = vmatpush1.msra.mxu0 0.0
        %2240 = vmatprep.subr.mxu0 0.0
        %2241 = vmatpush1.msra.mxu0 0.0
        %2242 = vmatprep.subr.mxu0 0.0
        %2243 = vmatpush1.msra.mxu0 0.0
        %2244 = vmatprep.subr.mxu0 0.0
        %2245 = vmatpush1.msra.mxu0 0.0
        %2246 = vmatprep.subr.mxu0 0.0
        %2247 = vmatpush1.msra.mxu0 0.0
        %2248 = vmatprep.subr.mxu0 0.0
        %2249 = vmatpush1.msra.mxu0 0.0
        %2250 = vmatprep.subr.mxu0 0.0
        %2251 = vmatpush1.msra.mxu0 0.0
        %2252 = vmatprep.subr.mxu0 0.0
        %2253 = vmatpush1.msra.mxu0 0.0
        %2254 = vmatprep.subr.mxu0 0.0
        %2255 = vmatpush1.msra.mxu0 0.0
        %2256 = vmatprep.subr.mxu0 0.0
        %2257 = vmatpush1.msra.mxu0 0.0
        %2258 = vmatprep.subr.mxu0 0.0
        %2259 = vmatpush1.msra.mxu0 0.0
        %2260 = vmatprep.subr.mxu0 0.0
        %2261 = vmatpush1.msra.mxu0 0.0
        %2262 = vmatprep.subr.mxu0 0.0
        %2263 = vmatpush1.msra.mxu0 0.0
        %2264 = vmatprep.subr.mxu0 0.0
        %2265 = vmatpush1.msra.mxu0 0.0
        %2266 = vmatprep.subr.mxu0 0.0
        %2267 = vmatpush1.msra.mxu0 0.0
        %2268 = vmatprep.mubr.f32.mxu0 0.0
        %v2269 = vand.u32 %v2193, 4294901760
        %v2270 = vsub.f32 %v2193, %v2269
        %v2271 = vand.u32 %v2270, 4294901760
        %v2272 = vsub.f32 %v2270, %v2271
        %v2273 = vand.u32 %v2272, 4294901760
        %2274 = vmatmul.mubr.f32.gmra.mrb[0].mxu0 %v2273
        %v2275 = vpop.f32.mrb[0].mxu0
        %v2276 = vadd.f32 %v2184, %v2275
        %v2277 = vpop.f32.mrb[0].mxu0
        %v2278 = vadd.f32 %v2188, %v2277
        %2279 = vmatprep.mubr.f32.mxu0 0.0
        %v2280 = vand.u32 %v2196, 4294901760
        %v2281 = vsub.f32 %v2196, %v2280
        %v2282 = vand.u32 %v2281, 4294901760
        %v2283 = vsub.f32 %v2281, %v2282
        %v2284 = vand.u32 %v2283, 4294901760
        %2285 = vmatmul.mubr.f32.gmra.mrb[0].mxu0 %v2284
        %v2286 = vpop.f32.mrb[0].mxu0
        %v2287 = vadd.f32 %v2184, %v2286
        %v2288 = vpop.f32.mrb[0].mxu0
        %v2289 = vadd.f32 %v2188, %v2288
        %2290 = vdwg.mxu0
        %v2291 = vand.u32 %v2174, 4294901760
        %v2292 = vsub.f32 %v2174, %v2291
        %v2293 = vand.u32 %v2292, 4294901760
        %v2294 = vsub.f32 %v2292, %v2293
        %v2295 = vand.u32 %v2294, 4294901760
        %2296 = vmatprep.subr.mxu0 %v2295
        %v2297 = vand.u32 %v2173, 4294901760
        %v2298 = vsub.f32 %v2173, %v2297
        %v2299 = vand.u32 %v2298, 4294901760
        %v2300 = vsub.f32 %v2298, %v2299
        %v2301 = vand.u32 %v2300, 4294901760
        %2302 = vmatpush1.msra.mxu0 %v2301
        %v2303 = vand.u32 %v2176, 4294901760
        %v2304 = vsub.f32 %v2176, %v2303
        %v2305 = vand.u32 %v2304, 4294901760
        %v2306 = vsub.f32 %v2304, %v2305
        %v2307 = vand.u32 %v2306, 4294901760
        %2308 = vmatprep.subr.mxu0 %v2307
        %v2309 = vand.u32 %v2175, 4294901760
        %v2310 = vsub.f32 %v2175, %v2309
        %v2311 = vand.u32 %v2310, 4294901760
        %v2312 = vsub.f32 %v2310, %v2311
        %v2313 = vand.u32 %v2312, 4294901760
        %2314 = vmatpush1.msra.mxu0 %v2313
        %v2315 = vand.u32 %v2178, 4294901760
        %v2316 = vsub.f32 %v2178, %v2315
        %v2317 = vand.u32 %v2316, 4294901760
        %v2318 = vsub.f32 %v2316, %v2317
        %v2319 = vand.u32 %v2318, 4294901760
        %2320 = vmatprep.subr.mxu0 %v2319
        %v2321 = vand.u32 %v2177, 4294901760
        %v2322 = vsub.f32 %v2177, %v2321
        %v2323 = vand.u32 %v2322, 4294901760
        %v2324 = vsub.f32 %v2322, %v2323
        %v2325 = vand.u32 %v2324, 4294901760
        %2326 = vmatpush1.msra.mxu0 %v2325
        %2327 = vmatprep.subr.mxu0 0.0
        %2328 = vmatpush1.msra.mxu0 0.0
        %2329 = vmatprep.subr.mxu0 0.0
        %2330 = vmatpush1.msra.mxu0 0.0
        %2331 = vmatprep.subr.mxu0 0.0
        %2332 = vmatpush1.msra.mxu0 0.0
        %2333 = vmatprep.subr.mxu0 0.0
        %2334 = vmatpush1.msra.mxu0 0.0
        %2335 = vmatprep.subr.mxu0 0.0
        %2336 = vmatpush1.msra.mxu0 0.0
        %2337 = vmatprep.subr.mxu0 0.0
        %2338 = vmatpush1.msra.mxu0 0.0
        %2339 = vmatprep.subr.mxu0 0.0
        %2340 = vmatpush1.msra.mxu0 0.0
        %2341 = vmatprep.subr.mxu0 0.0
        %2342 = vmatpush1.msra.mxu0 0.0
        %2343 = vmatprep.subr.mxu0 0.0
        %2344 = vmatpush1.msra.mxu0 0.0
        %2345 = vmatprep.subr.mxu0 0.0
        %2346 = vmatpush1.msra.mxu0 0.0
        %2347 = vmatprep.subr.mxu0 0.0
        %2348 = vmatpush1.msra.mxu0 0.0
        %2349 = vmatprep.subr.mxu0 0.0
        %2350 = vmatpush1.msra.mxu0 0.0
        %2351 = vmatprep.subr.mxu0 0.0
        %2352 = vmatpush1.msra.mxu0 0.0
        %2353 = vmatprep.subr.mxu0 0.0
        %2354 = vmatpush1.msra.mxu0 0.0
        %2355 = vmatprep.subr.mxu0 0.0
        %2356 = vmatpush1.msra.mxu0 0.0
        %2357 = vmatprep.subr.mxu0 0.0
        %2358 = vmatpush1.msra.mxu0 0.0
        %2359 = vmatprep.subr.mxu0 0.0
        %2360 = vmatpush1.msra.mxu0 0.0
        %2361 = vmatprep.subr.mxu0 0.0
        %2362 = vmatpush1.msra.mxu0 0.0
        %2363 = vmatprep.subr.mxu0 0.0
        %2364 = vmatpush1.msra.mxu0 0.0
        %2365 = vmatprep.subr.mxu0 0.0
        %2366 = vmatpush1.msra.mxu0 0.0
        %2367 = vmatprep.subr.mxu0 0.0
        %2368 = vmatpush1.msra.mxu0 0.0
        %2369 = vmatprep.subr.mxu0 0.0
        %2370 = vmatpush1.msra.mxu0 0.0
        %2371 = vmatprep.subr.mxu0 0.0
        %2372 = vmatpush1.msra.mxu0 0.0
        %2373 = vmatprep.subr.mxu0 0.0
        %2374 = vmatpush1.msra.mxu0 0.0
        %2375 = vmatprep.subr.mxu0 0.0
        %2376 = vmatpush1.msra.mxu0 0.0
        %2377 = vmatprep.subr.mxu0 0.0
        %2378 = vmatpush1.msra.mxu0 0.0
        %2379 = vmatprep.subr.mxu0 0.0
        %2380 = vmatpush1.msra.mxu0 0.0
        %2381 = vmatprep.subr.mxu0 0.0
        %2382 = vmatpush1.msra.mxu0 0.0
        %2383 = vmatprep.subr.mxu0 0.0
        %2384 = vmatpush1.msra.mxu0 0.0
        %2385 = vmatprep.mubr.f32.mxu0 0.0
        %v2386 = vand.u32 %v2193, 4294901760
        %2387 = vmatmul.mubr.f32.gmra.mrb[0].mxu0 %v2386
        %v2388 = vpop.f32.mrb[0].mxu0
        %v2389 = vadd.f32 %v2276, %v2388
        %v2390 = vpop.f32.mrb[0].mxu0
        %v2391 = vadd.f32 %v2278, %v2390
        %2392 = vmatprep.mubr.f32.mxu0 0.0
        %v2393 = vand.u32 %v2196, 4294901760
        %2394 = vmatmul.mubr.f32.gmra.mrb[0].mxu0 %v2393
        %v2395 = vpop.f32.mrb[0].mxu0
        %v2396 = vadd.f32 %v2287, %v2395
        %v2397 = vpop.f32.mrb[0].mxu0
        %v2398 = vadd.f32 %v2289, %v2397
        %2399 = vdwg.mxu0
        %v2400 = vand.u32 %v2174, 4294901760
        %v2401 = vsub.f32 %v2174, %v2400
        %2402 = vmatprep.subr.mxu0 %v2401
        %v2403 = vand.u32 %v2173, 4294901760
        %v2404 = vsub.f32 %v2173, %v2403
        %2405 = vmatpush1.msra.mxu0 %v2404
        %v2406 = vand.u32 %v2176, 4294901760
        %v2407 = vsub.f32 %v2176, %v2406
        %2408 = vmatprep.subr.mxu0 %v2407
        %v2409 = vand.u32 %v2175, 4294901760
        %v2410 = vsub.f32 %v2175, %v2409
        %2411 = vmatpush1.msra.mxu0 %v2410
        %v2412 = vand.u32 %v2178, 4294901760
        %v2413 = vsub.f32 %v2178, %v2412
        %2414 = vmatprep.subr.mxu0 %v2413
        %v2415 = vand.u32 %v2177, 4294901760
        %v2416 = vsub.f32 %v2177, %v2415
        %2417 = vmatpush1.msra.mxu0 %v2416
        %2418 = vmatprep.subr.mxu0 0.0
        %2419 = vmatpush1.msra.mxu0 0.0
        %2420 = vmatprep.subr.mxu0 0.0
        %2421 = vmatpush1.msra.mxu0 0.0
        %2422 = vmatprep.subr.mxu0 0.0
        %2423 = vmatpush1.msra.mxu0 0.0
        %2424 = vmatprep.subr.mxu0 0.0
        %2425 = vmatpush1.msra.mxu0 0.0
        %2426 = vmatprep.subr.mxu0 0.0
        %2427 = vmatpush1.msra.mxu0 0.0
        %2428 = vmatprep.subr.mxu0 0.0
        %2429 = vmatpush1.msra.mxu0 0.0
        %2430 = vmatprep.subr.mxu0 0.0
        %2431 = vmatpush1.msra.mxu0 0.0
        %2432 = vmatprep.subr.mxu0 0.0
        %2433 = vmatpush1.msra.mxu0 0.0
        %2434 = vmatprep.subr.mxu0 0.0
        %2435 = vmatpush1.msra.mxu0 0.0
        %2436 = vmatprep.subr.mxu0 0.0
        %2437 = vmatpush1.msra.mxu0 0.0
        %2438 = vmatprep.subr.mxu0 0.0
        %2439 = vmatpush1.msra.mxu0 0.0
        %2440 = vmatprep.subr.mxu0 0.0
        %2441 = vmatpush1.msra.mxu0 0.0
        %2442 = vmatprep.subr.mxu0 0.0
        %2443 = vmatpush1.msra.mxu0 0.0
        %2444 = vmatprep.subr.mxu0 0.0
        %2445 = vmatpush1.msra.mxu0 0.0
        %2446 = vmatprep.subr.mxu0 0.0
        %2447 = vmatpush1.msra.mxu0 0.0
        %2448 = vmatprep.subr.mxu0 0.0
        %2449 = vmatpush1.msra.mxu0 0.0
        %2450 = vmatprep.subr.mxu0 0.0
        %2451 = vmatpush1.msra.mxu0 0.0
        %2452 = vmatprep.subr.mxu0 0.0
        %2453 = vmatpush1.msra.mxu0 0.0
        %2454 = vmatprep.subr.mxu0 0.0
        %2455 = vmatpush1.msra.mxu0 0.0
        %2456 = vmatprep.subr.mxu0 0.0
        %2457 = vmatpush1.msra.mxu0 0.0
        %2458 = vmatprep.subr.mxu0 0.0
        %2459 = vmatpush1.msra.mxu0 0.0
        %2460 = vmatprep.subr.mxu0 0.0
        %2461 = vmatpush1.msra.mxu0 0.0
        %2462 = vmatprep.subr.mxu0 0.0
        %2463 = vmatpush1.msra.mxu0 0.0
        %2464 = vmatprep.subr.mxu0 0.0
        %2465 = vmatpush1.msra.mxu0 0.0
        %2466 = vmatprep.subr.mxu0 0.0
        %2467 = vmatpush1.msra.mxu0 0.0
        %2468 = vmatprep.subr.mxu0 0.0
        %2469 = vmatpush1.msra.mxu0 0.0
        %2470 = vmatprep.subr.mxu0 0.0
        %2471 = vmatpush1.msra.mxu0 0.0
        %2472 = vmatprep.subr.mxu0 0.0
        %2473 = vmatpush1.msra.mxu0 0.0
        %2474 = vmatprep.subr.mxu0 0.0
        %2475 = vmatpush1.msra.mxu0 0.0
        %2476 = vmatprep.mubr.f32.mxu0 0.0
        %v2477 = vand.u32 %v2193, 4294901760
        %v2478 = vsub.f32 %v2193, %v2477
        %2479 = vmatmul.mubr.f32.gmra.mrb[0].mxu0 %v2478
        %v2480 = vpop.f32.mrb[0].mxu0
        %v2481 = vadd.f32 %v2389, %v2480
        %v2482 = vpop.f32.mrb[0].mxu0
        %v2483 = vadd.f32 %v2391, %v2482
        %2484 = vmatprep.mubr.f32.mxu0 0.0
        %v2485 = vand.u32 %v2196, 4294901760
        %v2486 = vsub.f32 %v2196, %v2485
        %2487 = vmatmul.mubr.f32.gmra.mrb[0].mxu0 %v2486
        %v2488 = vpop.f32.mrb[0].mxu0
        %v2489 = vadd.f32 %v2396, %v2488
        %v2490 = vpop.f32.mrb[0].mxu0
        %v2491 = vadd.f32 %v2398, %v2490
        %2492 = vdwg.mxu0
        %v2493 = vand.u32 %v2174, 4294901760
        %2494 = vmatprep.subr.mxu0 %v2493
        %v2495 = vand.u32 %v2173, 4294901760
        %2496 = vmatpush1.msra.mxu0 %v2495
        %v2497 = vand.u32 %v2176, 4294901760
        %2498 = vmatprep.subr.mxu0 %v2497
        %v2499 = vand.u32 %v2175, 4294901760
        %2500 = vmatpush1.msra.mxu0 %v2499
        %v2501 = vand.u32 %v2178, 4294901760
        %2502 = vmatprep.subr.mxu0 %v2501
        %v2503 = vand.u32 %v2177, 4294901760
        %2504 = vmatpush1.msra.mxu0 %v2503
        %2505 = vmatprep.subr.mxu0 0.0
        %2506 = vmatpush1.msra.mxu0 0.0
        %2507 = vmatprep.subr.mxu0 0.0
        %2508 = vmatpush1.msra.mxu0 0.0
        %2509 = vmatprep.subr.mxu0 0.0
        %2510 = vmatpush1.msra.mxu0 0.0
        %2511 = vmatprep.subr.mxu0 0.0
        %2512 = vmatpush1.msra.mxu0 0.0
        %2513 = vmatprep.subr.mxu0 0.0
        %2514 = vmatpush1.msra.mxu0 0.0
        %2515 = vmatprep.subr.mxu0 0.0
        %2516 = vmatpush1.msra.mxu0 0.0
        %2517 = vmatprep.subr.mxu0 0.0
        %2518 = vmatpush1.msra.mxu0 0.0
        %2519 = vmatprep.subr.mxu0 0.0
        %2520 = vmatpush1.msra.mxu0 0.0
        %2521 = vmatprep.subr.mxu0 0.0
        %2522 = vmatpush1.msra.mxu0 0.0
        %2523 = vmatprep.subr.mxu0 0.0
        %2524 = vmatpush1.msra.mxu0 0.0
        %2525 = vmatprep.subr.mxu0 0.0
        %2526 = vmatpush1.msra.mxu0 0.0
        %2527 = vmatprep.subr.mxu0 0.0
        %2528 = vmatpush1.msra.mxu0 0.0
        %2529 = vmatprep.subr.mxu0 0.0
        %2530 = vmatpush1.msra.mxu0 0.0
        %2531 = vmatprep.subr.mxu0 0.0
        %2532 = vmatpush1.msra.mxu0 0.0
        %2533 = vmatprep.subr.mxu0 0.0
        %2534 = vmatpush1.msra.mxu0 0.0
        %2535 = vmatprep.subr.mxu0 0.0
        %2536 = vmatpush1.msra.mxu0 0.0
        %2537 = vmatprep.subr.mxu0 0.0
        %2538 = vmatpush1.msra.mxu0 0.0
        %2539 = vmatprep.subr.mxu0 0.0
        %2540 = vmatpush1.msra.mxu0 0.0
        %2541 = vmatprep.subr.mxu0 0.0
        %2542 = vmatpush1.msra.mxu0 0.0
        %2543 = vmatprep.subr.mxu0 0.0
        %2544 = vmatpush1.msra.mxu0 0.0
        %2545 = vmatprep.subr.mxu0 0.0
        %2546 = vmatpush1.msra.mxu0 0.0
        %2547 = vmatprep.subr.mxu0 0.0
        %2548 = vmatpush1.msra.mxu0 0.0
        %2549 = vmatprep.subr.mxu0 0.0
        %2550 = vmatpush1.msra.mxu0 0.0
        %2551 = vmatprep.subr.mxu0 0.0
        %2552 = vmatpush1.msra.mxu0 0.0
        %2553 = vmatprep.subr.mxu0 0.0
        %2554 = vmatpush1.msra.mxu0 0.0
        %2555 = vmatprep.subr.mxu0 0.0
        %2556 = vmatpush1.msra.mxu0 0.0
        %2557 = vmatprep.subr.mxu0 0.0
        %2558 = vmatpush1.msra.mxu0 0.0
        %2559 = vmatprep.subr.mxu0 0.0
        %2560 = vmatpush1.msra.mxu0 0.0
        %2561 = vmatprep.subr.mxu0 0.0
        %2562 = vmatpush1.msra.mxu0 0.0
        %2563 = vmatprep.mubr.f32.mxu0 0.0
        %v2564 = vand.u32 %v2193, 4294901760
        %v2565 = vsub.f32 %v2193, %v2564
        %v2566 = vand.u32 %v2565, 4294901760
        %2567 = vmatmul.mubr.f32.gmra.mrb[0].mxu0 %v2566
        %v2568 = vpop.f32.mrb[0].mxu0
        %v2569 = vadd.f32 %v2481, %v2568
        %v2570 = vpop.f32.mrb[0].mxu0
        %v2571 = vadd.f32 %v2483, %v2570
        %2572 = vmatprep.mubr.f32.mxu0 0.0
        %v2573 = vand.u32 %v2196, 4294901760
        %v2574 = vsub.f32 %v2196, %v2573
        %v2575 = vand.u32 %v2574, 4294901760
        %2576 = vmatmul.mubr.f32.gmra.mrb[0].mxu0 %v2575
        %v2577 = vpop.f32.mrb[0].mxu0
        %v2578 = vadd.f32 %v2489, %v2577
        %v2579 = vpop.f32.mrb[0].mxu0
        %v2580 = vadd.f32 %v2491, %v2579
        %2581 = vdwg.mxu0
        %v2582 = vand.u32 %v2174, 4294901760
        %v2583 = vsub.f32 %v2174, %v2582
        %v2584 = vand.u32 %v2583, 4294901760
        %2585 = vmatprep.subr.mxu0 %v2584
        %v2586 = vand.u32 %v2173, 4294901760
        %v2587 = vsub.f32 %v2173, %v2586
        %v2588 = vand.u32 %v2587, 4294901760
        %2589 = vmatpush1.msra.mxu0 %v2588
        %v2590 = vand.u32 %v2176, 4294901760
        %v2591 = vsub.f32 %v2176, %v2590
        %v2592 = vand.u32 %v2591, 4294901760
        %2593 = vmatprep.subr.mxu0 %v2592
        %v2594 = vand.u32 %v2175, 4294901760
        %v2595 = vsub.f32 %v2175, %v2594
        %v2596 = vand.u32 %v2595, 4294901760
        %2597 = vmatpush1.msra.mxu0 %v2596
        %v2598 = vand.u32 %v2178, 4294901760
        %v2599 = vsub.f32 %v2178, %v2598
        %v2600 = vand.u32 %v2599, 4294901760
        %2601 = vmatprep.subr.mxu0 %v2600
        %v2602 = vand.u32 %v2177, 4294901760
        %v2603 = vsub.f32 %v2177, %v2602
        %v2604 = vand.u32 %v2603, 4294901760
        %2605 = vmatpush1.msra.mxu0 %v2604
        %2606 = vmatprep.subr.mxu0 0.0
        %2607 = vmatpush1.msra.mxu0 0.0
        %2608 = vmatprep.subr.mxu0 0.0
        %2609 = vmatpush1.msra.mxu0 0.0
        %2610 = vmatprep.subr.mxu0 0.0
        %2611 = vmatpush1.msra.mxu0 0.0
        %2612 = vmatprep.subr.mxu0 0.0
        %2613 = vmatpush1.msra.mxu0 0.0
        %2614 = vmatprep.subr.mxu0 0.0
        %2615 = vmatpush1.msra.mxu0 0.0
        %2616 = vmatprep.subr.mxu0 0.0
        %2617 = vmatpush1.msra.mxu0 0.0
        %2618 = vmatprep.subr.mxu0 0.0
        %2619 = vmatpush1.msra.mxu0 0.0
        %2620 = vmatprep.subr.mxu0 0.0
        %2621 = vmatpush1.msra.mxu0 0.0
        %2622 = vmatprep.subr.mxu0 0.0
        %2623 = vmatpush1.msra.mxu0 0.0
        %2624 = vmatprep.subr.mxu0 0.0
        %2625 = vmatpush1.msra.mxu0 0.0
        %2626 = vmatprep.subr.mxu0 0.0
        %2627 = vmatpush1.msra.mxu0 0.0
        %2628 = vmatprep.subr.mxu0 0.0
        %2629 = vmatpush1.msra.mxu0 0.0
        %2630 = vmatprep.subr.mxu0 0.0
        %2631 = vmatpush1.msra.mxu0 0.0
        %2632 = vmatprep.subr.mxu0 0.0
        %2633 = vmatpush1.msra.mxu0 0.0
        %2634 = vmatprep.subr.mxu0 0.0
        %2635 = vmatpush1.msra.mxu0 0.0
        %2636 = vmatprep.subr.mxu0 0.0
        %2637 = vmatpush1.msra.mxu0 0.0
        %2638 = vmatprep.subr.mxu0 0.0
        %2639 = vmatpush1.msra.mxu0 0.0
        %2640 = vmatprep.subr.mxu0 0.0
        %2641 = vmatpush1.msra.mxu0 0.0
        %2642 = vmatprep.subr.mxu0 0.0
        %2643 = vmatpush1.msra.mxu0 0.0
        %2644 = vmatprep.subr.mxu0 0.0
        %2645 = vmatpush1.msra.mxu0 0.0
        %2646 = vmatprep.subr.mxu0 0.0
        %2647 = vmatpush1.msra.mxu0 0.0
        %2648 = vmatprep.subr.mxu0 0.0
        %2649 = vmatpush1.msra.mxu0 0.0
        %2650 = vmatprep.subr.mxu0 0.0
        %2651 = vmatpush1.msra.mxu0 0.0
        %2652 = vmatprep.subr.mxu0 0.0
        %2653 = vmatpush1.msra.mxu0 0.0
        %2654 = vmatprep.subr.mxu0 0.0
        %2655 = vmatpush1.msra.mxu0 0.0
        %2656 = vmatprep.subr.mxu0 0.0
        %2657 = vmatpush1.msra.mxu0 0.0
        %2658 = vmatprep.subr.mxu0 0.0
        %2659 = vmatpush1.msra.mxu0 0.0
        %2660 = vmatprep.subr.mxu0 0.0
        %2661 = vmatpush1.msra.mxu0 0.0
        %2662 = vmatprep.subr.mxu0 0.0
        %2663 = vmatpush1.msra.mxu0 0.0
        %2664 = vmatprep.mubr.f32.mxu0 0.0
        %v2665 = vand.u32 %v2193, 4294901760
        %2666 = vmatmul.mubr.f32.gmra.mrb[0].mxu0 %v2665
        %v2667 = vpop.f32.mrb[0].mxu0
        %v2668 = vadd.f32 %v2569, %v2667
        %v2669 = vpop.f32.mrb[0].mxu0
        %v2670 = vadd.f32 %v2571, %v2669
        %2671 = vmatprep.mubr.f32.mxu0 0.0
        %v2672 = vand.u32 %v2196, 4294901760
        %2673 = vmatmul.mubr.f32.gmra.mrb[0].mxu0 %v2672
        %v2674 = vpop.f32.mrb[0].mxu0
        %v2675 = vadd.f32 %v2578, %v2674
        %v2676 = vpop.f32.mrb[0].mxu0
        %v2677 = vadd.f32 %v2580, %v2676
        %2678 = vdwg.mxu0
        %v2679 = vand.u32 %v2174, 4294901760
        %2680 = vmatprep.subr.mxu0 %v2679
        %v2681 = vand.u32 %v2173, 4294901760
        %2682 = vmatpush1.msra.mxu0 %v2681
        %v2683 = vand.u32 %v2176, 4294901760
        %2684 = vmatprep.subr.mxu0 %v2683
        %v2685 = vand.u32 %v2175, 4294901760
        %2686 = vmatpush1.msra.mxu0 %v2685
        %v2687 = vand.u32 %v2178, 4294901760
        %2688 = vmatprep.subr.mxu0 %v2687
        %v2689 = vand.u32 %v2177, 4294901760
        %2690 = vmatpush1.msra.mxu0 %v2689
        %2691 = vmatprep.subr.mxu0 0.0
        %2692 = vmatpush1.msra.mxu0 0.0
        %2693 = vmatprep.subr.mxu0 0.0
        %2694 = vmatpush1.msra.mxu0 0.0
        %2695 = vmatprep.subr.mxu0 0.0
        %2696 = vmatpush1.msra.mxu0 0.0
        %2697 = vmatprep.subr.mxu0 0.0
        %2698 = vmatpush1.msra.mxu0 0.0
        %2699 = vmatprep.subr.mxu0 0.0
        %2700 = vmatpush1.msra.mxu0 0.0
        %2701 = vmatprep.subr.mxu0 0.0
        %2702 = vmatpush1.msra.mxu0 0.0
        %2703 = vmatprep.subr.mxu0 0.0
        %2704 = vmatpush1.msra.mxu0 0.0
        %2705 = vmatprep.subr.mxu0 0.0
        %2706 = vmatpush1.msra.mxu0 0.0
        %2707 = vmatprep.subr.mxu0 0.0
        %2708 = vmatpush1.msra.mxu0 0.0
        %2709 = vmatprep.subr.mxu0 0.0
        %2710 = vmatpush1.msra.mxu0 0.0
        %2711 = vmatprep.subr.mxu0 0.0
        %2712 = vmatpush1.msra.mxu0 0.0
        %2713 = vmatprep.subr.mxu0 0.0
        %2714 = vmatpush1.msra.mxu0 0.0
        %2715 = vmatprep.subr.mxu0 0.0
        %2716 = vmatpush1.msra.mxu0 0.0
        %2717 = vmatprep.subr.mxu0 0.0
        %2718 = vmatpush1.msra.mxu0 0.0
        %2719 = vmatprep.subr.mxu0 0.0
        %2720 = vmatpush1.msra.mxu0 0.0
        %2721 = vmatprep.subr.mxu0 0.0
        %2722 = vmatpush1.msra.mxu0 0.0
        %2723 = vmatprep.subr.mxu0 0.0
        %2724 = vmatpush1.msra.mxu0 0.0
        %2725 = vmatprep.subr.mxu0 0.0
        %2726 = vmatpush1.msra.mxu0 0.0
        %2727 = vmatprep.subr.mxu0 0.0
        %2728 = vmatpush1.msra.mxu0 0.0
        %2729 = vmatprep.subr.mxu0 0.0
        %2730 = vmatpush1.msra.mxu0 0.0
        %2731 = vmatprep.subr.mxu0 0.0
        %2732 = vmatpush1.msra.mxu0 0.0
        %2733 = vmatprep.subr.mxu0 0.0
        %2734 = vmatpush1.msra.mxu0 0.0
        %2735 = vmatprep.subr.mxu0 0.0
        %2736 = vmatpush1.msra.mxu0 0.0
        %2737 = vmatprep.subr.mxu0 0.0
        %2738 = vmatpush1.msra.mxu0 0.0
        %2739 = vmatprep.subr.mxu0 0.0
        %2740 = vmatpush1.msra.mxu0 0.0
        %2741 = vmatprep.subr.mxu0 0.0
        %2742 = vmatpush1.msra.mxu0 0.0
        %2743 = vmatprep.subr.mxu0 0.0
        %2744 = vmatpush1.msra.mxu0 0.0
        %2745 = vmatprep.subr.mxu0 0.0
        %2746 = vmatpush1.msra.mxu0 0.0
        %2747 = vmatprep.subr.mxu0 0.0
        %2748 = vmatpush1.msra.mxu0 0.0
        %2749 = vmatprep.mubr.f32.mxu0 0.0
        %v2750 = vand.u32 %v2193, 4294901760
        %2751 = vmatmul.mubr.f32.gmra.mrb[0].mxu0 %v2750
        %v2752 = vpop.f32.mrb[0].mxu0
        %v2753 = vadd.f32 %v2668, %v2752
        %v2754 = vpop.f32.mrb[0].mxu0
        %v2755 = vadd.f32 %v2670, %v2754
        %2756 = vmatprep.mubr.f32.mxu0 0.0
        %v2757 = vand.u32 %v2196, 4294901760
        %2758 = vmatmul.mubr.f32.gmra.mrb[0].mxu0 %v2757
        %v2759 = vpop.f32.mrb[0].mxu0
        %v2760 = vadd.f32 %v2675, %v2759
        %v2761 = vpop.f32.mrb[0].mxu0
        %v2762 = vadd.f32 %v2677, %v2761
        %2763 = vdwg.mxu0
        %v2764 = vxor.u32 %v2753, 2147483648
        %v2765 = vxor.u32 %v2760, 2147483648
        %v2766 = vmul.f32 %v2764, 1.442695
        %v2767 = vpow.pop %v2766
        %v2768 = vmul.f32 %v2765, 1.442695
        %v2769 = vpow.pop %v2768
        %v2770 = vadd.f32 %v2767, 1.0
        %v2771 = vadd.f32 %v2769, 1.0
        %v2772 = vrcp.pop %v2770
        %v2773 = vmul.f32 1.0, %v2772
        %v2774 = vrcp.pop %v2771
        %v2775 = vmul.f32 1.0, %v2774
        %v2776 = vmul.f32 %v2773, %v2755
        %v2777 = vmul.f32 %v2775, %v2762
        %v2778 = vadd.f32 %v2776, %v1063
        %v2779 = vadd.f32 %v2777, %v1070
        %v2780 = vld [vmem:[%s9] sm:$0x1]
        %v2782 = vlaneseq
        %v2783 = vshrl.u32 %v2782, 7
        %v2784 = vsub.s32 0, %v2783
        %v2785 = vrot.slane %v2780, %v2784
        %v2787 = vadd.f32 %v2778, %v2785
        %v2788 = vadd.f32 %v2779, %v2785
        %2789 = vst.msk [vmem:[%s426] sm:$0xff] %vm2191, %v2787
        %2790 = vst.msk [vmem:[%s426 + $0x8] sm:$0xff] %vm2191, %v2788
        %s2791 = sand.u32 %s256, 1
        %s2792 = scalar_lea.sflag [#allocation4], %s2791
        %s2793 = sand.u32 %s256, 1
        %s2794 = smul.addr %s2793, 16
        %s2795 = scalar_lea.vmem [#allocation7], %s2794
        // Predicated region
        $region69: #{tpu_custom_call.1} parent=59 // pred_check
          %p2796 = pneg %p266
        $region70: #{tpu_custom_call.1} parent=59 // pred_check_branch
          %2798 = sbr.rel (%p2796) target = $region72
        $region71: #{tpu_custom_call.1} parent=59 // pred_region
          %s2799 = smul.u32 2, %s28
          %s2800 = ssub.s32 3, %s2799
          %p2801 = scmp.lt.s32.totalorder %s2800, 2
          %s2802 = scalar_select %p2801, %s2800, 2
          %s2803 = smul.u32 128, %s2802
          %s2805 = ssub.s32 256, %s2803
          %2806 = vsyncadd %s2792, %s2805
          %p2807 = scmp.ne.s32.totalorder 0, %s2803
          %s2808 = smul.addr %s2799, 128
          %s2809 = scalar_lea.hbm %s10, %s2808
          %s2810 = smul.u32 8, %s2802
          %s2811 = sshll.u32 %s2795, 4
          %s2812 = int_to_ptr.vmem [resolvable:$true] %s2811
          %s2813 = sshll.u32 %s2810, 4
          %2817 = dma.vmem_to_hbm [thread:$0]  (%p2807), %s2812, %s2813, %s2809, %s2792, 128, 128, 8
        $region72: #{tpu_custom_call.1} parent=59 // pred_fallthru
          _
      $region60: #{tpu_custom_call.1} parent=5 // pred_fallthru
        _
      %p2818 = scmp.le.s32.totalorder 2, %s23
      // Predicated region
      $region73: #{tpu_custom_call.1} parent=5 // pred_check
        %p2819 = pneg %p2818
      $region74: #{tpu_custom_call.1} parent=5 // pred_check_branch
        %2821 = sbr.rel (%p2819) target = $region76
      $region75: #{tpu_custom_call.1} parent=5 // pred_region
        %s2822 = ssub.s32 %s23, 2
        // Predicated region
        $region77: #{tpu_custom_call.1} parent=75 // pred_check
          %p2823 = pneg %p272
        $region78: #{tpu_custom_call.1} parent=75 // pred_check_branch
          %2825 = sbr.rel (%p2823) target = $region80
        $region79: #{tpu_custom_call.1} parent=75 // pred_region
          %s2826 = sand.u32 %s257, 1
          %s2827 = scalar_lea.sflag [#allocation4], %s2826
          %s2828 = sand.u32 %s257, 1
          %s2829 = smul.addr %s2828, 16
          %s2830 = scalar_lea.vmem [#allocation7], %s2829
          %2831 = dma.done %s2827, 256
        $region80: #{tpu_custom_call.1} parent=75 // pred_fallthru
          _
      $region76: #{tpu_custom_call.1} parent=5 // pred_fallthru
        _
    $region6: #{tpu_custom_call.1} parent=1 // loop_footer
      %s27 = sadd.s32 1, %s23
    $region7: #{tpu_custom_call.1} parent=1 // loop_footer_branch
      %22 = sbr.rel target = $region3
    $region8: #{tpu_custom_call.1} parent=1 // loop_exit
      _
    %2832 = vsyncpa [#allocation3], 1
    %s2833 = scalar_lea.sflag [#allocation3], 1
    %2834 = vsyncpa %s2833, 1
    %2835 = vsyncpa [#allocation6], 1
    %2836 = vsyncpa [#allocation4], 1
    %s2837 = scalar_lea.sflag [#allocation4], 1
    %2838 = vsyncpa %s2837, 1

</llo_original>
